<compile_context>
chip_gen: v7x
topology: tpu7x:2x2x1
jax: 0.10.0
libtpu: 0.0.40
codegen_flags: <defaults>
</compile_context>

<pallas_src>
import functools
import math

import jax
import jax.numpy as jnp
from jax import lax
from jax.experimental import pallas as pl
from jax.experimental.pallas import tpu as pltpu

_HALO = 8  # halo rows on each side of a sequence tile (>= 2 needed; 8 keeps
           # TE a multiple of the f32/bf16 sublane packing)


# ----------------------------- kernel helpers -------------------------------
def _layer_norm_f32(x, gamma, beta, eps=1e-6):
    # PyTorch LayerNorm in this repo: mean over last dim, *unbiased* std,
    # division by (std + eps), then gamma * . + beta.   (all in f32, exact div)
    mean = jnp.mean(x, axis=-1, keepdims=True)
    diff = x - mean
    var = jnp.sum(diff * diff, axis=-1, keepdims=True) * (1.0 / (x.shape[-1] - 1))
    return gamma * (diff / (jnp.sqrt(var) + eps)) + beta


# --------------------------------- kernel -----------------------------------
def encoder_layer_kernel(
    x_ref,
    ln1_g_ref, ln1_b_ref,
    wqkv_ref, wo_ref,
    ln2_g_ref, ln2_b_ref,
    c1w_ref, c1b_ref, c2w_ref, c2b_ref,
    out_ref,
    xpad_ref, qpad_ref, k_ref, v_ref,
    *, num_heads, kd, vd, tile_q,
):
    S = x_ref.shape[1]
    H = x_ref.shape[2]
    dk = kd // num_heads
    dv = vd // num_heads
    te = tile_q + 2 * _HALO
    dtype = x_ref.dtype
    scale = float(dk) ** -0.5
    # bf16 exp on v6e/v7x EUP (~2x f32); keep stats/accumulation in f32.
    exp_dtype = jnp.bfloat16 if jnp.dtype(dtype) == jnp.dtype(jnp.bfloat16) else jnp.float32

    j = pl.program_id(1)

    # ---- once per batch element: LN1 + fused QKV projection, stored lane-dense
    #      in VMEM scratch; raw x zero-padded by HALO rows on each side. -------
    @pl.when(j == 0)
    def _init():
        x_f = x_ref[0]                                        # (S, H), input dtype
        xn1 = _layer_norm_f32(x_f.astype(jnp.float32),
                              ln1_g_ref[...], ln1_b_ref[...])
        qkv = jnp.dot(xn1.astype(dtype), wqkv_ref[...],
                      preferred_element_type=jnp.float32)     # (S, 2*KD+VD) f32

        zh = jnp.zeros((_HALO, H), dtype)
        xpad_ref[...] = jnp.concatenate([zh, x_f, zh], axis=0)

        zq = jnp.zeros((_HALO, kd), dtype)
        qpad_ref[...] = jnp.concatenate(
            [zq, (qkv[:, :kd] * scale).astype(dtype), zq], axis=0)
        k_ref[...] = qkv[:, kd:2 * kd].astype(dtype)          # (S, KD) lane-dense
        v_ref[...] = qkv[:, 2 * kd:].astype(dtype)            # (S, VD) lane-dense

    # ---- per sequence tile: attention over the extended (halo) window --------
    start = pl.multiple_of(j * tile_q, tile_q)                # padded-coord offset

    q_e = qpad_ref[pl.ds(start, te), :]                       # (TE, KD)
    k_all = k_ref[...]                                        # (S, KD)
    v_all = v_ref[...]                                        # (S, VD)

    # Static per-head loop: only one (TE, S) f32 logits slab live per head.
    # TODO(synk): flash-style KV tiling would bound this further for long S.
    ctx_parts = []
    for h in range(num_heads):
        q_h = q_e[:, h * dk:(h + 1) * dk]                     # (TE, dk)
        k_h = k_all[:, h * dk:(h + 1) * dk]                   # (S, dk)
        v_h = v_all[:, h * dv:(h + 1) * dv]                   # (S, dv)

        logits = lax.dot_general(q_h, k_h, (((1,), (1,)), ((), ())),
                                 preferred_element_type=jnp.float32)  # (TE, S)
        m = jnp.max(logits, axis=-1, keepdims=True)
        p = jnp.exp((logits - m).astype(exp_dtype))
        denom = jnp.sum(p.astype(jnp.float32), axis=-1, keepdims=True)
        pv = jnp.dot(p.astype(dtype), v_h,
                     preferred_element_type=jnp.float32)      # (TE, dv) f32
        ctx_parts.append(pv / denom)                          # normalize after matmul

    # merge heads (lane concat) and project once: contraction depth = VD.
    ctx = jnp.concatenate(ctx_parts, axis=-1).astype(dtype)   # (TE, VD)
    y_e = jnp.dot(ctx, wo_ref[...],
                  preferred_element_type=jnp.float32)         # (TE, H) f32

    x_e = xpad_ref[pl.ds(start, te), :].astype(jnp.float32)   # raw x, halo window
    x1 = x_e + y_e                                            # residual (dropout = id)

    # rows of the extended window that fall outside the real sequence
    row = lax.broadcasted_iota(jnp.int32, (te, 1), 0) + (start - _HALO)
    valid = jnp.logical_and(row >= 0, row < S)

    xn2 = _layer_norm_f32(x1, ln2_g_ref[...], ln2_b_ref[...])
    xn2 = jnp.where(valid, xn2, 0.0).astype(dtype)            # == conv zero padding

    def conv3(z, w3_ref, b_ref):
        # out[t] = z[t-1] @ w[0] + z[t] @ w[1] + z[t+1] @ w[2] + b
        # pltpu.roll needs non-negative shifts: roll by TE-1 == roll by -1.
        # Wrap only touches the outermost window rows, which are never emitted.
        up = pltpu.roll(z, shift=1, axis=0)                   # z[t-1]
        dn = pltpu.roll(z, shift=te - 1, axis=0)              # z[t+1]
        return (jnp.dot(up, w3_ref[0], preferred_element_type=jnp.float32)
                + jnp.dot(z, w3_ref[1], preferred_element_type=jnp.float32)
                + jnp.dot(dn, w3_ref[2], preferred_element_type=jnp.float32)
                + b_ref[...].astype(jnp.float32))

    h1 = jnp.maximum(conv3(xn2, c1w_ref, c1b_ref), 0.0)
    h1 = jnp.where(valid, h1, 0.0).astype(dtype)              # zero pad rows for conv2
    # ReLU after the last conv too — matches the PyTorch loop.
    h2 = jnp.maximum(conv3(h1, c2w_ref, c2b_ref), 0.0)

    out_ref[0] = (x1[_HALO:_HALO + tile_q, :]
                  + h2[_HALO:_HALO + tile_q, :]).astype(out_ref.dtype)


# --------------------------------- wrapper ----------------------------------
def encoder_layer(x, params, num_heads, seq_tile=None):
    B, S, H = x.shape
    wq, wk, wv, wo = params["wq"], params["wk"], params["wv"], params["wo"]
    KD = wq.shape[1]
    VD = wv.shape[1]
    assert KD % num_heads == 0 and VD % num_heads == 0, \
        "key/value depth must be divisible by num_heads"

    if seq_tile is None:
        seq_tile = min(S, 256)
    TQ = seq_tile
    assert S % TQ == 0, "sequence length must be divisible by the sequence tile"
    TE = TQ + 2 * _HALO

    # fused QKV weight (one wide MXU matmul); wo stays (VD, H) for the
    # merged-heads output projection.
    wqkv = jnp.concatenate([wq, wk, wv], axis=1)              # (H, 2*KD+VD)

    weights = [
        params["ln1_g"], params["ln1_b"],
        wqkv, wo,
        params["ln2_g"], params["ln2_b"],
        params["c1w"], params["c1b"], params["c2w"], params["c2b"],
    ]

    def full_spec(a):
        # TODO(synk): force single-buffering of these invariant weight blocks
        # (pipeline_mode / persistent scratch) to halve residency on v7x.
        return pl.BlockSpec(a.shape, lambda b, j, _n=a.ndim: (0,) * _n)

    in_specs = [pl.BlockSpec((1, S, H), lambda b, j: (b, 0, 0))] + [
        full_spec(wgt) for wgt in weights
    ]
    out_specs = pl.BlockSpec((1, TQ, H), lambda b, j: (b, j, 0))

    scratch_shapes = [
        pltpu.VMEM((S + 2 * _HALO, H), x.dtype),              # zero-padded raw x
        pltpu.VMEM((S + 2 * _HALO, KD), x.dtype),             # q (scaled), lane-dense
        pltpu.VMEM((S, KD), x.dtype),                         # k, lane-dense
        pltpu.VMEM((S, VD), x.dtype),                         # v, lane-dense
    ]

    # Shape-derived VMEM budget (instead of a hard-coded per-generation number).
    itemsize = jnp.dtype(x.dtype).itemsize
    scratch_bytes = ((S + 2 * _HALO) * (H + KD) + S * (KD + VD)) * itemsize
    weight_bytes = 2 * sum(math.prod(w.shape) * jnp.dtype(w.dtype).itemsize
                           for w in weights)                  # double-buffered
    io_bytes = 2 * (S * H + TQ * H) * itemsize                # x block + out block
    transient_bytes = 3 * TE * S * 4 + 6 * TE * max(H, KD, VD) * 4
    est = scratch_bytes + weight_bytes + io_bytes + transient_bytes
    vmem_limit = int(min(max(est * 3 // 2, 32 * 1024 * 1024), 100 * 1024 * 1024))

    return pl.pallas_call(
        functools.partial(encoder_layer_kernel, num_heads=num_heads,
                          kd=KD, vd=VD, tile_q=TQ),
        out_shape=jax.ShapeDtypeStruct((B, S, H), x.dtype),
        grid_spec=pltpu.PrefetchScalarGridSpec(
            num_scalar_prefetch=0,
            grid=(B, S // TQ),
            in_specs=in_specs,
            out_specs=out_specs,
            scratch_shapes=scratch_shapes,
        ),
        compiler_params=pltpu.CompilerParams(
            # j-axis must be "arbitrary": tile 0 fills the per-batch scratch.
            dimension_semantics=("parallel", "arbitrary"),
            vmem_limit_bytes=vmem_limit,
        ),
    )(x, *weights)


# ------------------------- pure-JAX reference (check) ------------------------
def reference(x, p, num_heads):
    def ln(z, g, b, eps=1e-6):
        mean = z.mean(-1, keepdims=True)
        diff = z - mean
        var = (diff * diff).sum(-1, keepdims=True) / (z.shape[-1] - 1)
        return g * diff / (jnp.sqrt(var) + eps) + b

    B, S, H = x.shape
    xn = ln(x, p["ln1_g"][0], p["ln1_b"][0])
    q = xn @ p["wq"]
    k = xn @ p["wk"]
    v = xn @ p["wv"]
    kd = q.shape[-1]
    vd = v.shape[-1]
    dk, dv = kd // num_heads, vd // num_heads
    q = q.reshape(B, S, num_heads, dk).transpose(0, 2, 1, 3) * (dk ** -0.5)
    k = k.reshape(B, S, num_heads, dk).transpose(0, 2, 1, 3)
    v = v.reshape(B, S, num_heads, dv).transpose(0, 2, 1, 3)
    logits = jnp.einsum("bhqd,bhkd->bhqk", q, k)
    w = jax.nn.softmax(logits, axis=-1)
    ctx = jnp.einsum("bhqk,bhkd->bhqd", w, v)
    ctx = ctx.transpose(0, 2, 1, 3).reshape(B, S, vd)
    y = ctx @ p["wo"]
    x = x + y

    xn = ln(x, p["ln2_g"][0], p["ln2_b"][0])

    def conv3_both(z, w3, b):
        zp = jnp.pad(z, ((0, 0), (1, 1), (0, 0)))
        return (zp[:, 0:S] @ w3[0] + zp[:, 1:S + 1] @ w3[1]
                + zp[:, 2:S + 2] @ w3[2] + b)

    h1 = jnp.maximum(conv3_both(xn, p["c1w"], p["c1b"][0]), 0.0)
    h2 = jnp.maximum(conv3_both(h1, p["c2w"], p["c2b"][0]), 0.0)
    return x + h2


# ----------------------------------- main ------------------------------------
if __name__ == "__main__":
    B, S, H = 2, 16, 32
    KD, VD, F = 32, 32, 64
    NUM_HEADS = 4
    SEQ_TILE = 8          # 2 sequence tiles per batch element -> exercises halos

    key = jax.random.PRNGKey(0)
    ks = jax.random.split(key, 10)

    params = {
        "ln1_g": jnp.ones((1, H), jnp.float32),
        "ln1_b": jnp.zeros((1, H), jnp.float32),
        "wq": 0.1 * jax.random.normal(ks[0], (H, KD), jnp.float32),
        "wk": 0.1 * jax.random.normal(ks[1], (H, KD), jnp.float32),
        "wv": 0.1 * jax.random.normal(ks[2], (H, VD), jnp.float32),
        "wo": 0.1 * jax.random.normal(ks[3], (VD, H), jnp.float32),
        "ln2_g": jnp.ones((1, H), jnp.float32),
        "ln2_b": jnp.zeros((1, H), jnp.float32),
        "c1w": 0.1 * jax.random.normal(ks[4], (3, H, F), jnp.float32),
        "c1b": 0.1 * jax.random.normal(ks[5], (1, F), jnp.float32),
        "c2w": 0.1 * jax.random.normal(ks[6], (3, F, H), jnp.float32),
        "c2b": 0.1 * jax.random.normal(ks[7], (1, H), jnp.float32),
    }
    x = jax.random.normal(ks[8], (B, S, H), jnp.float32)

    out = encoder_layer(x, params, NUM_HEADS, seq_tile=SEQ_TILE)
    out = jax.block_until_ready(out)

    ref = jax.block_until_ready(reference(x, params, NUM_HEADS))
    assert out.shape == (B, S, H)
    assert jnp.allclose(out, ref, rtol=2e-3, atol=2e-3), (
        f"max abs diff = {jnp.max(jnp.abs(out - ref))}")

    print("KERNEL_OK")
</pallas_src>

<mosaic_0001>
module attributes {stable_mosaic.version = 11 : i64} {
  func.func @encoder_layer_kernel(%arg0: i32, %arg1: i32, %arg2: memref<1x16x32xf32, #tpu.memory_space<vmem>>, %arg3: memref<1x32xf32, #tpu.memory_space<vmem>>, %arg4: memref<1x32xf32, #tpu.memory_space<vmem>>, %arg5: memref<32x96xf32, #tpu.memory_space<vmem>>, %arg6: memref<32x32xf32, #tpu.memory_space<vmem>>, %arg7: memref<1x32xf32, #tpu.memory_space<vmem>>, %arg8: memref<1x32xf32, #tpu.memory_space<vmem>>, %arg9: memref<3x32x64xf32, #tpu.memory_space<vmem>>, %arg10: memref<1x64xf32, #tpu.memory_space<vmem>>, %arg11: memref<3x64x32xf32, #tpu.memory_space<vmem>>, %arg12: memref<1x32xf32, #tpu.memory_space<vmem>>, %arg13: memref<1x8x32xf32, #tpu.memory_space<vmem>>, %arg14: memref<32x32xf32, #tpu.memory_space<vmem>>, %arg15: memref<32x32xf32, #tpu.memory_space<vmem>>, %arg16: memref<16x32xf32, #tpu.memory_space<vmem>>, %arg17: memref<16x32xf32, #tpu.memory_space<vmem>>) attributes {dimension_semantics = [#tpu.dimension_semantics<parallel>, #tpu.dimension_semantics<arbitrary>], iteration_bounds = array<i64: 2, 2>, scalar_prefetch = 0 : i64, scratch_operands = 4 : i64, tpu.core_type = #tpu.core_type<tc>, window_params = [{transform_indices = @transform_0, window_bounds = array<i64: 1, 16, 32>}, {pipeline_mode = #tpu.pipeline_mode<synchronous>, transform_indices = @transform_1, window_bounds = array<i64: 1, 32>}, {pipeline_mode = #tpu.pipeline_mode<synchronous>, transform_indices = @transform_2, window_bounds = array<i64: 1, 32>}, {pipeline_mode = #tpu.pipeline_mode<synchronous>, transform_indices = @transform_3, window_bounds = array<i64: 32, 96>}, {pipeline_mode = #tpu.pipeline_mode<synchronous>, transform_indices = @transform_4, window_bounds = array<i64: 32, 32>}, {pipeline_mode = #tpu.pipeline_mode<synchronous>, transform_indices = @transform_5, window_bounds = array<i64: 1, 32>}, {pipeline_mode = #tpu.pipeline_mode<synchronous>, transform_indices = @transform_6, window_bounds = array<i64: 1, 32>}, {pipeline_mode = #tpu.pipeline_mode<synchronous>, transform_indices = @transform_7, window_bounds = array<i64: 3, 32, 64>}, {pipeline_mode = #tpu.pipeline_mode<synchronous>, transform_indices = @transform_8, window_bounds = array<i64: 1, 64>}, {pipeline_mode = #tpu.pipeline_mode<synchronous>, transform_indices = @transform_9, window_bounds = array<i64: 3, 64, 32>}, {pipeline_mode = #tpu.pipeline_mode<synchronous>, transform_indices = @transform_10, window_bounds = array<i64: 1, 32>}, {transform_indices = @transform_11, window_bounds = array<i64: 1, 8, 32>}]} {
    %c0_i32 = arith.constant 0 : i32
    %0 = arith.cmpi eq, %arg1, %c0_i32 : i32
    %1 = arith.extui %0 : i1 to i32
    %c0_i32_0 = arith.constant 0 : i32
    %2 = arith.cmpi ne, %1, %c0_i32_0 : i32
    scf.if %2 {
      %c0_70 = arith.constant 0 : index
      %c0_71 = arith.constant 0 : index
      %c0_72 = arith.constant 0 : index
      %152 = vector.load %arg2[%c0_70, %c0_71, %c0_72] : memref<1x16x32xf32, #tpu.memory_space<vmem>>, vector<1x16x32xf32>
      %153 = vector.shape_cast %152 : vector<1x16x32xf32> to vector<16x32xf32>
      %c0_73 = arith.constant 0 : index
      %c0_74 = arith.constant 0 : index
      %154 = vector.load %arg3[%c0_73, %c0_74] : memref<1x32xf32, #tpu.memory_space<vmem>>, vector<1x32xf32>
      %c0_75 = arith.constant 0 : index
      %c0_76 = arith.constant 0 : index
      %155 = vector.load %arg4[%c0_75, %c0_76] : memref<1x32xf32, #tpu.memory_space<vmem>>, vector<1x32xf32>
      %cst_77 = arith.constant dense<0.000000e+00> : vector<16xf32>
      %156 = vector.multi_reduction <add>, %153, %cst_77 [1] : vector<16x32xf32> to vector<16xf32>
      %157 = vector.shape_cast %156 : vector<16xf32> to vector<16x1xf32>
      %cst_78 = arith.constant 3.200000e+01 : f32
      %158 = vector.broadcast %cst_78 : f32 to vector<16x1xf32>
      %159 = arith.divf %157, %158 : vector<16x1xf32>
      %160 = vector.broadcast %159 : vector<16x1xf32> to vector<16x32xf32>
      %161 = arith.subf %153, %160 : vector<16x32xf32>
      %162 = arith.mulf %161, %161 : vector<16x32xf32>
      %cst_79 = arith.constant dense<0.000000e+00> : vector<16xf32>
      %163 = vector.multi_reduction <add>, %162, %cst_79 [1] : vector<16x32xf32> to vector<16xf32>
      %164 = vector.shape_cast %163 : vector<16xf32> to vector<16x1xf32>
      %cst_80 = arith.constant 0.0322580636 : f32
      %165 = vector.broadcast %cst_80 : f32 to vector<16x1xf32>
      %166 = arith.mulf %164, %165 : vector<16x1xf32>
      %167 = math.sqrt %166 : vector<16x1xf32>
      %cst_81 = arith.constant 9.99999997E-7 : f32
      %168 = vector.broadcast %cst_81 : f32 to vector<16x1xf32>
      %169 = arith.addf %167, %168 : vector<16x1xf32>
      %170 = vector.broadcast %169 : vector<16x1xf32> to vector<16x32xf32>
      %171 = arith.divf %161, %170 : vector<16x32xf32>
      %172 = vector.broadcast %154 : vector<1x32xf32> to vector<16x32xf32>
      %173 = arith.mulf %172, %171 : vector<16x32xf32>
      %174 = vector.broadcast %155 : vector<1x32xf32> to vector<16x32xf32>
      %175 = arith.addf %173, %174 : vector<16x32xf32>
      %c0_82 = arith.constant 0 : index
      %c0_83 = arith.constant 0 : index
      %176 = vector.load %arg5[%c0_82, %c0_83] : memref<32x96xf32, #tpu.memory_space<vmem>>, vector<32x96xf32>
      %cst_84 = arith.constant dense<0.000000e+00> : vector<16x96xf32>
      %177 = tpu.matmul %175, %176, %cst_84 {dimension_numbers = #tpu.dot_dimension_numbers<[1], [0], [0], [1], [0, 0, 1, 1], [], []>} : vector<16x32xf32>, vector<32x96xf32>, vector<16x96xf32> -> vector<16x96xf32>
      %cst_85 = arith.constant 0.000000e+00 : f32
      %178 = vector.broadcast %cst_85 : f32 to vector<8x32xf32>
      %179 = tpu.concatenate %178, %153, %178 in 0 : vector<8x32xf32>, vector<16x32xf32>, vector<8x32xf32> -> vector<32x32xf32>
      %c0_86 = arith.constant 0 : index
      %c0_87 = arith.constant 0 : index
      %180 = vector.load %arg14[%c0_86, %c0_87] : memref<32x32xf32, #tpu.memory_space<vmem>>, vector<32x32xf32>
      tpu.vector_store %arg14[%c0_86, %c0_87], %179 {strides = array<i32>} : memref<32x32xf32, #tpu.memory_space<vmem>>, vector<32x32xf32>,
      %cst_88 = arith.constant 0.000000e+00 : f32
      %181 = vector.broadcast %cst_88 : f32 to vector<8x32xf32>
      %182 = vector.extract_strided_slice %177 {offsets = [0, 0], sizes = [16, 32], strides = [1, 1]} : vector<16x96xf32> to vector<16x32xf32>
      %cst_89 = arith.constant 0.353553385 : f32
      %183 = vector.broadcast %cst_89 : f32 to vector<16x32xf32>
      %184 = arith.mulf %182, %183 : vector<16x32xf32>
      %185 = tpu.concatenate %181, %184, %181 in 0 : vector<8x32xf32>, vector<16x32xf32>, vector<8x32xf32> -> vector<32x32xf32>
      %c0_90 = arith.constant 0 : index
      %c0_91 = arith.constant 0 : index
      %186 = vector.load %arg15[%c0_90, %c0_91] : memref<32x32xf32, #tpu.memory_space<vmem>>, vector<32x32xf32>
      tpu.vector_store %arg15[%c0_90, %c0_91], %185 {strides = array<i32>} : memref<32x32xf32, #tpu.memory_space<vmem>>, vector<32x32xf32>,
      %187 = vector.extract_strided_slice %177 {offsets = [0, 32], sizes = [16, 32], strides = [1, 1]} : vector<16x96xf32> to vector<16x32xf32>
      %c0_92 = arith.constant 0 : index
      %c0_93 = arith.constant 0 : index
      %188 = vector.load %arg16[%c0_92, %c0_93] : memref<16x32xf32, #tpu.memory_space<vmem>>, vector<16x32xf32>
      tpu.vector_store %arg16[%c0_92, %c0_93], %187 {strides = array<i32>} : memref<16x32xf32, #tpu.memory_space<vmem>>, vector<16x32xf32>,
      %189 = vector.extract_strided_slice %177 {offsets = [0, 64], sizes = [16, 32], strides = [1, 1]} : vector<16x96xf32> to vector<16x32xf32>
      %c0_94 = arith.constant 0 : index
      %c0_95 = arith.constant 0 : index
      %190 = vector.load %arg17[%c0_94, %c0_95] : memref<16x32xf32, #tpu.memory_space<vmem>>, vector<16x32xf32>
      tpu.vector_store %arg17[%c0_94, %c0_95], %189 {strides = array<i32>} : memref<16x32xf32, #tpu.memory_space<vmem>>, vector<16x32xf32>,
    } else {
    }
    %c8_i32 = arith.constant 8 : i32
    %3 = arith.muli %arg1, %c8_i32 : i32
    %4 = tpu.assume_multiple %3, 8 : i32
    %5 = arith.index_cast %4 : i32 to index
    %c0 = arith.constant 0 : index
    %6 = vector.load %arg15[%5, %c0] : memref<32x32xf32, #tpu.memory_space<vmem>>, vector<24x32xf32>
    %c0_1 = arith.constant 0 : index
    %c0_2 = arith.constant 0 : index
    %7 = vector.load %arg16[%c0_1, %c0_2] : memref<16x32xf32, #tpu.memory_space<vmem>>, vector<16x32xf32>
    %c0_3 = arith.constant 0 : index
    %c0_4 = arith.constant 0 : index
    %8 = vector.load %arg17[%c0_3, %c0_4] : memref<16x32xf32, #tpu.memory_space<vmem>>, vector<16x32xf32>
    %9 = vector.extract_strided_slice %6 {offsets = [0, 0], sizes = [24, 8], strides = [1, 1]} : vector<24x32xf32> to vector<24x8xf32>
    %10 = vector.extract_strided_slice %7 {offsets = [0, 0], sizes = [16, 8], strides = [1, 1]} : vector<16x32xf32> to vector<16x8xf32>
    %11 = vector.extract_strided_slice %8 {offsets = [0, 0], sizes = [16, 8], strides = [1, 1]} : vector<16x32xf32> to vector<16x8xf32>
    %cst = arith.constant dense<0.000000e+00> : vector<24x16xf32>
    %12 = tpu.matmul %9, %10, %cst {dimension_numbers = #tpu.dot_dimension_numbers<[1], [1], [0], [0], [0, 0, 1, 0], [], []>} : vector<24x8xf32>, vector<16x8xf32>, vector<24x16xf32> -> vector<24x16xf32>
    %cst_5 = arith.constant dense<0xFF800000> : vector<24xf32>
    %13 = vector.multi_reduction <maximumf>, %12, %cst_5 [1] : vector<24x16xf32> to vector<24xf32>
    %14 = vector.shape_cast %13 : vector<24xf32> to vector<24x1xf32>
    %15 = vector.broadcast %14 : vector<24x1xf32> to vector<24x16xf32>
    %16 = arith.subf %12, %15 : vector<24x16xf32>
    %17 = math.exp %16 : vector<24x16xf32>
    %cst_6 = arith.constant dense<0.000000e+00> : vector<24xf32>
    %18 = vector.multi_reduction <add>, %17, %cst_6 [1] : vector<24x16xf32> to vector<24xf32>
    %19 = vector.shape_cast %18 : vector<24xf32> to vector<24x1xf32>
    %cst_7 = arith.constant dense<0.000000e+00> : vector<24x8xf32>
    %20 = tpu.matmul %17, %11, %cst_7 {dimension_numbers = #tpu.dot_dimension_numbers<[1], [0], [0], [1], [0, 0, 1, 1], [], []>} : vector<24x16xf32>, vector<16x8xf32>, vector<24x8xf32> -> vector<24x8xf32>
    %21 = vector.broadcast %19 : vector<24x1xf32> to vector<24x8xf32>
    %22 = arith.divf %20, %21 : vector<24x8xf32>
    %23 = vector.extract_strided_slice %6 {offsets = [0, 8], sizes = [24, 8], strides = [1, 1]} : vector<24x32xf32> to vector<24x8xf32>
    %24 = vector.extract_strided_slice %7 {offsets = [0, 8], sizes = [16, 8], strides = [1, 1]} : vector<16x32xf32> to vector<16x8xf32>
    %25 = vector.extract_strided_slice %8 {offsets = [0, 8], sizes = [16, 8], strides = [1, 1]} : vector<16x32xf32> to vector<16x8xf32>
    %cst_8 = arith.constant dense<0.000000e+00> : vector<24x16xf32>
    %26 = tpu.matmul %23, %24, %cst_8 {dimension_numbers = #tpu.dot_dimension_numbers<[1], [1], [0], [0], [0, 0, 1, 0], [], []>} : vector<24x8xf32>, vector<16x8xf32>, vector<24x16xf32> -> vector<24x16xf32>
    %cst_9 = arith.constant dense<0xFF800000> : vector<24xf32>
    %27 = vector.multi_reduction <maximumf>, %26, %cst_9 [1] : vector<24x16xf32> to vector<24xf32>
    %28 = vector.shape_cast %27 : vector<24xf32> to vector<24x1xf32>
    %29 = vector.broadcast %28 : vector<24x1xf32> to vector<24x16xf32>
    %30 = arith.subf %26, %29 : vector<24x16xf32>
    %31 = math.exp %30 : vector<24x16xf32>
    %cst_10 = arith.constant dense<0.000000e+00> : vector<24xf32>
    %32 = vector.multi_reduction <add>, %31, %cst_10 [1] : vector<24x16xf32> to vector<24xf32>
    %33 = vector.shape_cast %32 : vector<24xf32> to vector<24x1xf32>
    %cst_11 = arith.constant dense<0.000000e+00> : vector<24x8xf32>
    %34 = tpu.matmul %31, %25, %cst_11 {dimension_numbers = #tpu.dot_dimension_numbers<[1], [0], [0], [1], [0, 0, 1, 1], [], []>} : vector<24x16xf32>, vector<16x8xf32>, vector<24x8xf32> -> vector<24x8xf32>
    %35 = vector.broadcast %33 : vector<24x1xf32> to vector<24x8xf32>
    %36 = arith.divf %34, %35 : vector<24x8xf32>
    %37 = vector.extract_strided_slice %6 {offsets = [0, 16], sizes = [24, 8], strides = [1, 1]} : vector<24x32xf32> to vector<24x8xf32>
    %38 = vector.extract_strided_slice %7 {offsets = [0, 16], sizes = [16, 8], strides = [1, 1]} : vector<16x32xf32> to vector<16x8xf32>
    %39 = vector.extract_strided_slice %8 {offsets = [0, 16], sizes = [16, 8], strides = [1, 1]} : vector<16x32xf32> to vector<16x8xf32>
    %cst_12 = arith.constant dense<0.000000e+00> : vector<24x16xf32>
    %40 = tpu.matmul %37, %38, %cst_12 {dimension_numbers = #tpu.dot_dimension_numbers<[1], [1], [0], [0], [0, 0, 1, 0], [], []>} : vector<24x8xf32>, vector<16x8xf32>, vector<24x16xf32> -> vector<24x16xf32>
    %cst_13 = arith.constant dense<0xFF800000> : vector<24xf32>
    %41 = vector.multi_reduction <maximumf>, %40, %cst_13 [1] : vector<24x16xf32> to vector<24xf32>
    %42 = vector.shape_cast %41 : vector<24xf32> to vector<24x1xf32>
    %43 = vector.broadcast %42 : vector<24x1xf32> to vector<24x16xf32>
    %44 = arith.subf %40, %43 : vector<24x16xf32>
    %45 = math.exp %44 : vector<24x16xf32>
    %cst_14 = arith.constant dense<0.000000e+00> : vector<24xf32>
    %46 = vector.multi_reduction <add>, %45, %cst_14 [1] : vector<24x16xf32> to vector<24xf32>
    %47 = vector.shape_cast %46 : vector<24xf32> to vector<24x1xf32>
    %cst_15 = arith.constant dense<0.000000e+00> : vector<24x8xf32>
    %48 = tpu.matmul %45, %39, %cst_15 {dimension_numbers = #tpu.dot_dimension_numbers<[1], [0], [0], [1], [0, 0, 1, 1], [], []>} : vector<24x16xf32>, vector<16x8xf32>, vector<24x8xf32> -> vector<24x8xf32>
    %49 = vector.broadcast %47 : vector<24x1xf32> to vector<24x8xf32>
    %50 = arith.divf %48, %49 : vector<24x8xf32>
    %51 = vector.extract_strided_slice %6 {offsets = [0, 24], sizes = [24, 8], strides = [1, 1]} : vector<24x32xf32> to vector<24x8xf32>
    %52 = vector.extract_strided_slice %7 {offsets = [0, 24], sizes = [16, 8], strides = [1, 1]} : vector<16x32xf32> to vector<16x8xf32>
    %53 = vector.extract_strided_slice %8 {offsets = [0, 24], sizes = [16, 8], strides = [1, 1]} : vector<16x32xf32> to vector<16x8xf32>
    %cst_16 = arith.constant dense<0.000000e+00> : vector<24x16xf32>
    %54 = tpu.matmul %51, %52, %cst_16 {dimension_numbers = #tpu.dot_dimension_numbers<[1], [1], [0], [0], [0, 0, 1, 0], [], []>} : vector<24x8xf32>, vector<16x8xf32>, vector<24x16xf32> -> vector<24x16xf32>
    %cst_17 = arith.constant dense<0xFF800000> : vector<24xf32>
    %55 = vector.multi_reduction <maximumf>, %54, %cst_17 [1] : vector<24x16xf32> to vector<24xf32>
    %56 = vector.shape_cast %55 : vector<24xf32> to vector<24x1xf32>
    %57 = vector.broadcast %56 : vector<24x1xf32> to vector<24x16xf32>
    %58 = arith.subf %54, %57 : vector<24x16xf32>
    %59 = math.exp %58 : vector<24x16xf32>
    %cst_18 = arith.constant dense<0.000000e+00> : vector<24xf32>
    %60 = vector.multi_reduction <add>, %59, %cst_18 [1] : vector<24x16xf32> to vector<24xf32>
    %61 = vector.shape_cast %60 : vector<24xf32> to vector<24x1xf32>
    %cst_19 = arith.constant dense<0.000000e+00> : vector<24x8xf32>
    %62 = tpu.matmul %59, %53, %cst_19 {dimension_numbers = #tpu.dot_dimension_numbers<[1], [0], [0], [1], [0, 0, 1, 1], [], []>} : vector<24x16xf32>, vector<16x8xf32>, vector<24x8xf32> -> vector<24x8xf32>
    %63 = vector.broadcast %61 : vector<24x1xf32> to vector<24x8xf32>
    %64 = arith.divf %62, %63 : vector<24x8xf32>
    %65 = tpu.concatenate %22, %36, %50, %64 in 1 : vector<24x8xf32>, vector<24x8xf32>, vector<24x8xf32>, vector<24x8xf32> -> vector<24x32xf32>
    %c0_20 = arith.constant 0 : index
    %c0_21 = arith.constant 0 : index
    %66 = vector.load %arg6[%c0_20, %c0_21] : memref<32x32xf32, #tpu.memory_space<vmem>>, vector<32x32xf32>
    %cst_22 = arith.constant dense<0.000000e+00> : vector<24x32xf32>
    %67 = tpu.matmul %65, %66, %cst_22 {dimension_numbers = #tpu.dot_dimension_numbers<[1], [0], [0], [1], [0, 0, 1, 1], [], []>} : vector<24x32xf32>, vector<32x32xf32>, vector<24x32xf32> -> vector<24x32xf32>
    %68 = arith.index_cast %4 : i32 to index
    %c0_23 = arith.constant 0 : index
    %69 = vector.load %arg14[%68, %c0_23] : memref<32x32xf32, #tpu.memory_space<vmem>>, vector<24x32xf32>
    %70 = arith.addf %69, %67 : vector<24x32xf32>
    %71 = tpu.iota {dimensions = array<i32: 0>} : vector<24x1xi32>
    %c8_i32_24 = arith.constant 8 : i32
    %72 = arith.subi %4, %c8_i32_24 : i32
    %73 = vector.broadcast %72 : i32 to vector<24x1xi32>
    %74 = arith.addi %71, %73 : vector<24x1xi32>
    %c0_i32_25 = arith.constant 0 : i32
    %75 = vector.broadcast %c0_i32_25 : i32 to vector<24x1xi32>
    %76 = arith.cmpi sge, %74, %75 : vector<24x1xi32>
    %c16_i32 = arith.constant 16 : i32
    %77 = vector.broadcast %c16_i32 : i32 to vector<24x1xi32>
    %78 = arith.cmpi slt, %74, %77 : vector<24x1xi32>
    %79 = arith.andi %76, %78 : vector<24x1xi1>
    %c0_26 = arith.constant 0 : index
    %c0_27 = arith.constant 0 : index
    %80 = vector.load %arg7[%c0_26, %c0_27] : memref<1x32xf32, #tpu.memory_space<vmem>>, vector<1x32xf32>
    %c0_28 = arith.constant 0 : index
    %c0_29 = arith.constant 0 : index
    %81 = vector.load %arg8[%c0_28, %c0_29] : memref<1x32xf32, #tpu.memory_space<vmem>>, vector<1x32xf32>
    %cst_30 = arith.constant dense<0.000000e+00> : vector<24xf32>
    %82 = vector.multi_reduction <add>, %70, %cst_30 [1] : vector<24x32xf32> to vector<24xf32>
    %83 = vector.shape_cast %82 : vector<24xf32> to vector<24x1xf32>
    %cst_31 = arith.constant 3.200000e+01 : f32
    %84 = vector.broadcast %cst_31 : f32 to vector<24x1xf32>
    %85 = arith.divf %83, %84 : vector<24x1xf32>
    %86 = vector.broadcast %85 : vector<24x1xf32> to vector<24x32xf32>
    %87 = arith.subf %70, %86 : vector<24x32xf32>
    %88 = arith.mulf %87, %87 : vector<24x32xf32>
    %cst_32 = arith.constant dense<0.000000e+00> : vector<24xf32>
    %89 = vector.multi_reduction <add>, %88, %cst_32 [1] : vector<24x32xf32> to vector<24xf32>
    %90 = vector.shape_cast %89 : vector<24xf32> to vector<24x1xf32>
    %cst_33 = arith.constant 0.0322580636 : f32
    %91 = vector.broadcast %cst_33 : f32 to vector<24x1xf32>
    %92 = arith.mulf %90, %91 : vector<24x1xf32>
    %93 = math.sqrt %92 : vector<24x1xf32>
    %cst_34 = arith.constant 9.99999997E-7 : f32
    %94 = vector.broadcast %cst_34 : f32 to vector<24x1xf32>
    %95 = arith.addf %93, %94 : vector<24x1xf32>
    %96 = vector.broadcast %95 : vector<24x1xf32> to vector<24x32xf32>
    %97 = arith.divf %87, %96 : vector<24x32xf32>
    %98 = vector.broadcast %80 : vector<1x32xf32> to vector<24x32xf32>
    %99 = arith.mulf %98, %97 : vector<24x32xf32>
    %100 = vector.broadcast %81 : vector<1x32xf32> to vector<24x32xf32>
    %101 = arith.addf %99, %100 : vector<24x32xf32>
    %cst_35 = arith.constant 0.000000e+00 : f32
    %102 = vector.shape_cast %79 : vector<24x1xi1> to vector<24x1xi1>
    %103 = vector.broadcast %102 : vector<24x1xi1> to vector<24x32xi1>
    %104 = vector.broadcast %cst_35 : f32 to vector<24x32xf32>
    %105 = arith.select %103, %101, %104 : vector<24x32xi1>, vector<24x32xf32>
    %c1_i32 = arith.constant 1 : i32
    %106 = tpu.dynamic_rotate %105 by %c1_i32 dim 0 : vector<24x32xf32>, i32 -> vector<24x32xf32>
    %c23_i32 = arith.constant 23 : i32
    %107 = tpu.dynamic_rotate %105 by %c23_i32 dim 0 : vector<24x32xf32>, i32 -> vector<24x32xf32>
    %c0_36 = arith.constant 0 : index
    %c0_37 = arith.constant 0 : index
    %c0_38 = arith.constant 0 : index
    %108 = vector.load %arg9[%c0_36, %c0_37, %c0_38] : memref<3x32x64xf32, #tpu.memory_space<vmem>>, vector<1x32x64xf32>
    %109 = vector.shape_cast %108 : vector<1x32x64xf32> to vector<32x64xf32>
    %cst_39 = arith.constant dense<0.000000e+00> : vector<24x64xf32>
    %110 = tpu.matmul %106, %109, %cst_39 {dimension_numbers = #tpu.dot_dimension_numbers<[1], [0], [0], [1], [0, 0, 1, 1], [], []>} : vector<24x32xf32>, vector<32x64xf32>, vector<24x64xf32> -> vector<24x64xf32>
    %c1 = arith.constant 1 : index
    %c0_40 = arith.constant 0 : index
    %c0_41 = arith.constant 0 : index
    %111 = vector.load %arg9[%c1, %c0_40, %c0_41] : memref<3x32x64xf32, #tpu.memory_space<vmem>>, vector<1x32x64xf32>
    %112 = vector.shape_cast %111 : vector<1x32x64xf32> to vector<32x64xf32>
    %cst_42 = arith.constant dense<0.000000e+00> : vector<24x64xf32>
    %113 = tpu.matmul %105, %112, %cst_42 {dimension_numbers = #tpu.dot_dimension_numbers<[1], [0], [0], [1], [0, 0, 1, 1], [], []>} : vector<24x32xf32>, vector<32x64xf32>, vector<24x64xf32> -> vector<24x64xf32>
    %114 = arith.addf %110, %113 : vector<24x64xf32>
    %c2 = arith.constant 2 : index
    %c0_43 = arith.constant 0 : index
    %c0_44 = arith.constant 0 : index
    %115 = vector.load %arg9[%c2, %c0_43, %c0_44] : memref<3x32x64xf32, #tpu.memory_space<vmem>>, vector<1x32x64xf32>
    %116 = vector.shape_cast %115 : vector<1x32x64xf32> to vector<32x64xf32>
    %cst_45 = arith.constant dense<0.000000e+00> : vector<24x64xf32>
    %117 = tpu.matmul %107, %116, %cst_45 {dimension_numbers = #tpu.dot_dimension_numbers<[1], [0], [0], [1], [0, 0, 1, 1], [], []>} : vector<24x32xf32>, vector<32x64xf32>, vector<24x64xf32> -> vector<24x64xf32>
    %118 = arith.addf %114, %117 : vector<24x64xf32>
    %c0_46 = arith.constant 0 : index
    %c0_47 = arith.constant 0 : index
    %119 = vector.load %arg10[%c0_46, %c0_47] : memref<1x64xf32, #tpu.memory_space<vmem>>, vector<1x64xf32>
    %120 = vector.broadcast %119 : vector<1x64xf32> to vector<24x64xf32>
    %121 = arith.addf %118, %120 : vector<24x64xf32>
    %cst_48 = arith.constant 0.000000e+00 : f32
    %122 = vector.broadcast %cst_48 : f32 to vector<24x64xf32>
    %123 = arith.maximumf %121, %122 : vector<24x64xf32>
    %cst_49 = arith.constant 0.000000e+00 : f32
    %124 = vector.shape_cast %79 : vector<24x1xi1> to vector<24x1xi1>
    %125 = vector.broadcast %124 : vector<24x1xi1> to vector<24x64xi1>
    %126 = vector.broadcast %cst_49 : f32 to vector<24x64xf32>
    %127 = arith.select %125, %123, %126 : vector<24x64xi1>, vector<24x64xf32>
    %c1_i32_50 = arith.constant 1 : i32
    %128 = tpu.dynamic_rotate %127 by %c1_i32_50 dim 0 : vector<24x64xf32>, i32 -> vector<24x64xf32>
    %c23_i32_51 = arith.constant 23 : i32
    %129 = tpu.dynamic_rotate %127 by %c23_i32_51 dim 0 : vector<24x64xf32>, i32 -> vector<24x64xf32>
    %c0_52 = arith.constant 0 : index
    %c0_53 = arith.constant 0 : index
    %c0_54 = arith.constant 0 : index
    %130 = vector.load %arg11[%c0_52, %c0_53, %c0_54] : memref<3x64x32xf32, #tpu.memory_space<vmem>>, vector<1x64x32xf32>
    %131 = vector.shape_cast %130 : vector<1x64x32xf32> to vector<64x32xf32>
    %cst_55 = arith.constant dense<0.000000e+00> : vector<24x32xf32>
    %132 = tpu.matmul %128, %131, %cst_55 {dimension_numbers = #tpu.dot_dimension_numbers<[1], [0], [0], [1], [0, 0, 1, 1], [], []>} : vector<24x64xf32>, vector<64x32xf32>, vector<24x32xf32> -> vector<24x32xf32>
    %c1_56 = arith.constant 1 : index
    %c0_57 = arith.constant 0 : index
    %c0_58 = arith.constant 0 : index
    %133 = vector.load %arg11[%c1_56, %c0_57, %c0_58] : memref<3x64x32xf32, #tpu.memory_space<vmem>>, vector<1x64x32xf32>
    %134 = vector.shape_cast %133 : vector<1x64x32xf32> to vector<64x32xf32>
    %cst_59 = arith.constant dense<0.000000e+00> : vector<24x32xf32>
    %135 = tpu.matmul %127, %134, %cst_59 {dimension_numbers = #tpu.dot_dimension_numbers<[1], [0], [0], [1], [0, 0, 1, 1], [], []>} : vector<24x64xf32>, vector<64x32xf32>, vector<24x32xf32> -> vector<24x32xf32>
    %136 = arith.addf %132, %135 : vector<24x32xf32>
    %c2_60 = arith.constant 2 : index
    %c0_61 = arith.constant 0 : index
    %c0_62 = arith.constant 0 : index
    %137 = vector.load %arg11[%c2_60, %c0_61, %c0_62] : memref<3x64x32xf32, #tpu.memory_space<vmem>>, vector<1x64x32xf32>
    %138 = vector.shape_cast %137 : vector<1x64x32xf32> to vector<64x32xf32>
    %cst_63 = arith.constant dense<0.000000e+00> : vector<24x32xf32>
    %139 = tpu.matmul %129, %138, %cst_63 {dimension_numbers = #tpu.dot_dimension_numbers<[1], [0], [0], [1], [0, 0, 1, 1], [], []>} : vector<24x64xf32>, vector<64x32xf32>, vector<24x32xf32> -> vector<24x32xf32>
    %140 = arith.addf %136, %139 : vector<24x32xf32>
    %c0_64 = arith.constant 0 : index
    %c0_65 = arith.constant 0 : index
    %141 = vector.load %arg12[%c0_64, %c0_65] : memref<1x32xf32, #tpu.memory_space<vmem>>, vector<1x32xf32>
    %142 = vector.broadcast %141 : vector<1x32xf32> to vector<24x32xf32>
    %143 = arith.addf %140, %142 : vector<24x32xf32>
    %cst_66 = arith.constant 0.000000e+00 : f32
    %144 = vector.broadcast %cst_66 : f32 to vector<24x32xf32>
    %145 = arith.maximumf %143, %144 : vector<24x32xf32>
    %146 = vector.extract_strided_slice %70 {offsets = [8, 0], sizes = [8, 32], strides = [1, 1]} : vector<24x32xf32> to vector<8x32xf32>
    %147 = vector.extract_strided_slice %145 {offsets = [8, 0], sizes = [8, 32], strides = [1, 1]} : vector<24x32xf32> to vector<8x32xf32>
    %148 = arith.addf %146, %147 : vector<8x32xf32>
    %c0_67 = arith.constant 0 : index
    %c0_68 = arith.constant 0 : index
    %c0_69 = arith.constant 0 : index
    %149 = vector.load %arg13[%c0_67, %c0_68, %c0_69] : memref<1x8x32xf32, #tpu.memory_space<vmem>>, vector<1x8x32xf32>
    %150 = vector.shape_cast %149 : vector<1x8x32xf32> to vector<8x32xf32>
    %151 = vector.shape_cast %148 : vector<8x32xf32> to vector<1x8x32xf32>
    tpu.vector_store %arg13[%c0_67, %c0_68, %c0_69], %151 {strides = array<i32>} : memref<1x8x32xf32, #tpu.memory_space<vmem>>, vector<1x8x32xf32>,
    return
  }
  func.func @transform_0(%arg0: i32, %arg1: i32) -> (i32, i32, i32) {
    %c0_i32 = arith.constant 0 : i32
    %c0_i32_0 = arith.constant 0 : i32
    %c0_i32_1 = arith.constant 0 : i32
    return %arg0, %c0_i32, %c0_i32_0 : i32, i32, i32
  }
  func.func @transform_1(%arg0: i32, %arg1: i32) -> (i32, i32) {
    %c0_i32 = arith.constant 0 : i32
    %c0_i32_0 = arith.constant 0 : i32
    %c0_i32_1 = arith.constant 0 : i32
    return %c0_i32, %c0_i32_0 : i32, i32
  }
  func.func @transform_2(%arg0: i32, %arg1: i32) -> (i32, i32) {
    %c0_i32 = arith.constant 0 : i32
    %c0_i32_0 = arith.constant 0 : i32
    %c0_i32_1 = arith.constant 0 : i32
    return %c0_i32, %c0_i32_0 : i32, i32
  }
  func.func @transform_3(%arg0: i32, %arg1: i32) -> (i32, i32) {
    %c0_i32 = arith.constant 0 : i32
    %c0_i32_0 = arith.constant 0 : i32
    %c0_i32_1 = arith.constant 0 : i32
    return %c0_i32, %c0_i32_0 : i32, i32
  }
  func.func @transform_4(%arg0: i32, %arg1: i32) -> (i32, i32) {
    %c0_i32 = arith.constant 0 : i32
    %c0_i32_0 = arith.constant 0 : i32
    %c0_i32_1 = arith.constant 0 : i32
    return %c0_i32, %c0_i32_0 : i32, i32
  }
  func.func @transform_5(%arg0: i32, %arg1: i32) -> (i32, i32) {
    %c0_i32 = arith.constant 0 : i32
    %c0_i32_0 = arith.constant 0 : i32
    %c0_i32_1 = arith.constant 0 : i32
    return %c0_i32, %c0_i32_0 : i32, i32
  }
  func.func @transform_6(%arg0: i32, %arg1: i32) -> (i32, i32) {
    %c0_i32 = arith.constant 0 : i32
    %c0_i32_0 = arith.constant 0 : i32
    %c0_i32_1 = arith.constant 0 : i32
    return %c0_i32, %c0_i32_0 : i32, i32
  }
  func.func @transform_7(%arg0: i32, %arg1: i32) -> (i32, i32, i32) {
    %c0_i32 = arith.constant 0 : i32
    %c0_i32_0 = arith.constant 0 : i32
    %c0_i32_1 = arith.constant 0 : i32
    %c0_i32_2 = arith.constant 0 : i32
    return %c0_i32, %c0_i32_0, %c0_i32_1 : i32, i32, i32
  }
  func.func @transform_8(%arg0: i32, %arg1: i32) -> (i32, i32) {
    %c0_i32 = arith.constant 0 : i32
    %c0_i32_0 = arith.constant 0 : i32
    %c0_i32_1 = arith.constant 0 : i32
    return %c0_i32, %c0_i32_0 : i32, i32
  }
  func.func @transform_9(%arg0: i32, %arg1: i32) -> (i32, i32, i32) {
    %c0_i32 = arith.constant 0 : i32
    %c0_i32_0 = arith.constant 0 : i32
    %c0_i32_1 = arith.constant 0 : i32
    %c0_i32_2 = arith.constant 0 : i32
    return %c0_i32, %c0_i32_0, %c0_i32_1 : i32, i32, i32
  }
  func.func @transform_10(%arg0: i32, %arg1: i32) -> (i32, i32) {
    %c0_i32 = arith.constant 0 : i32
    %c0_i32_0 = arith.constant 0 : i32
    %c0_i32_1 = arith.constant 0 : i32
    return %c0_i32, %c0_i32_0 : i32, i32
  }
  func.func @transform_11(%arg0: i32, %arg1: i32) -> (i32, i32, i32) {
    %c0_i32 = arith.constant 0 : i32
    %c0_i32_0 = arith.constant 0 : i32
    return %arg0, %arg1, %c0_i32 : i32, i32, i32
  }
}

</mosaic_0001>

<llo_original>
// kernel: tpu_custom_call.1
$region0: #{tpu_custom_call.1}
  #allocation0 [shape = 'u32[]', space=smem, size = 0x4, offset = 0x4, fixed_abs, tag = 'smem constant byte address 0x4 - core index']
  #allocation1 [shape = 'u32[144,128]{1,0:T(1,128)}', space=vmem, size = 0x12000, scoped, tag = 'internal scratch']
  #allocation2 [shape = 'f32[32,32]{1,0:T(8,128)}', space=vmem, size = 0x4000, scoped, tag = 'scratch operand']
  #allocation3 [shape = 'f32[32,32]{1,0:T(8,128)}', space=vmem, size = 0x4000, scoped, tag = 'scratch operand']
  #allocation4 [shape = 'f32[16,32]{1,0:T(8,128)}', space=vmem, size = 0x2000, scoped, tag = 'scratch operand']
  #allocation5 [shape = 'f32[16,32]{1,0:T(8,128)}', space=vmem, size = 0x2000, scoped, tag = 'scratch operand']
  %s0 = inlined_call_operand.vmem [shape: f32[2,16,32], index: 0, kind: input, shape index: {}]
  %s1 = inlined_call_operand.vmem [shape: f32[1,32], index: 1, kind: input, shape index: {}]
  %s2 = inlined_call_operand.vmem [shape: f32[1,32], index: 2, kind: input, shape index: {}]
  %s3 = inlined_call_operand.vmem [shape: f32[32,96], index: 3, kind: input, shape index: {}]
  %s4 = inlined_call_operand.vmem [shape: f32[32,32], index: 4, kind: input, shape index: {}]
  %s5 = inlined_call_operand.vmem [shape: f32[1,32], index: 5, kind: input, shape index: {}]
  %s6 = inlined_call_operand.vmem [shape: f32[1,32], index: 6, kind: input, shape index: {}]
  %s7 = inlined_call_operand.vmem [shape: f32[3,32,64], index: 7, kind: input, shape index: {}]
  %s8 = inlined_call_operand.vmem [shape: f32[1,64], index: 8, kind: input, shape index: {}]
  %s9 = inlined_call_operand.vmem [shape: f32[3,64,32], index: 9, kind: input, shape index: {}]
  %s10 = inlined_call_operand.vmem [shape: f32[1,32], index: 10, kind: input, shape index: {}]
  %s11 = inlined_call_operand.hbm [shape: f32[2,16,32], index: 11, kind: output, shape index: {}]
  %s12 = sld [smem:[#allocation0]]
  $region81: #{tpu_custom_call.1} parent=0
    _
  %s14 = ssub.s32 1, %s12
  %s15 = scalar_select 0, %s14, %s12
  $region1: #{tpu_custom_call.1} parent=0
    #allocation6 [shape = 'u8[8192]{0}', space=vmem, size = 0x2000, scoped, tag = 'output window, operand 0']
    #allocation7 [shape = 's32[2]{0}', space=sflag, size = 0x8, scoped, tag = 'scoped memory for tpu_custom_call.1']
    %16 = vsyncpa [#allocation7], 0
    %s17 = scalar_lea.sflag [#allocation7], 1
    %18 = vsyncpa %s17, 0
    loop: start=0, step=1, limit=6
    $region2: #{tpu_custom_call.1} parent=1 // loop_pre_header
      _
    $region3: #{tpu_custom_call.1} parent=1 // loop_header
      %s20 = sphi 0, %s24
      %p21 = scmp.ge.s32.totalorder %s20, 6
      %s27 = sphi 0, %s39
      %s28 = sphi 0, %s35
      %s29 = sphi 0, %s27
      %s30 = sphi 0, %s28
      %s31 = sphi 0, %s29
      %s32 = sphi 0, %s30
      %s42 = sphi 0, %s44
      %s45 = sphi 0, %s42
      %s46 = sphi 0, %s45
      %s62 = sphi 0, %s46
      %s66 = sphi 0, %s66
      %s68 = sphi 0, %s66
      %s69 = sphi 0, %s68
      %s83 = sphi 0, %s69
      %s87 = sphi 0, %s87
      %s89 = sphi 0, %s87
      %s90 = sphi 0, %s89
      %s104 = sphi 0, %s90
      %s108 = sphi 0, %s108
      %s110 = sphi 0, %s108
      %s111 = sphi 0, %s110
      %s125 = sphi 0, %s111
      %s129 = sphi 0, %s129
      %s131 = sphi 0, %s129
      %s132 = sphi 0, %s131
      %s146 = sphi 0, %s132
      %s150 = sphi 0, %s150
      %s152 = sphi 0, %s150
      %s153 = sphi 0, %s152
      %s167 = sphi 0, %s153
      %s171 = sphi 0, %s171
      %s173 = sphi 0, %s171
      %s174 = sphi 0, %s173
      %s188 = sphi 0, %s174
      %s192 = sphi 0, %s192
      %s194 = sphi 0, %s192
      %s195 = sphi 0, %s194
      %s209 = sphi 0, %s195
      %s213 = sphi 0, %s213
      %s215 = sphi 0, %s213
      %s216 = sphi 0, %s215
      %s230 = sphi 0, %s216
      %s234 = sphi 0, %s234
      %s236 = sphi 0, %s234
      %s237 = sphi 0, %s236
      %s251 = sphi 0, %s237
      %s255 = sphi 0, %s255
      %s257 = sphi 0, %s255
      %s258 = sphi 0, %s257
      %s272 = sphi 0, %s258
      %s280 = sphi 0, %s282
      %s283 = sphi 0, %s280
      %s284 = sphi 0, %s283
      %s300 = sphi 0, %s284
    $region4: #{tpu_custom_call.1} parent=1 // loop_header_branch
      %23 = sbr.rel (%p21) target = $region8
    $region5: #{tpu_custom_call.1} parent=1 // loop_body
      %s25 = ssub.s32 %s20, 1
      %s26 = ssub.s32 %s20, 2
      %s33 = sadd.s32 1, %s28
      %p34 = scmp.ge.s32.totalorder %s33, 2
      %s35 = scalar_select %p34, 0, %s33
      %s36 = sadd.s32 1, %s27
      %s37 = scalar_select %p34, %s36, %s27
      %p38 = scmp.ge.s32.totalorder %s37, 2
      %s39 = scalar_select %p38, 0, %s37
      %s40 = ssub.s32 %s27, %s39
      %p41 = scmp.eq.s32.totalorder %s40, 0
      %s43 = sadd.s32 %s42, 1
      %s44 = scalar_select %p41, %s42, %s43
      %p47 = pneg %p41
      %p48 = scmp.eq.s32.totalorder %s20, 3
      %p49 = por %p47, %p48
      %p50 = scmp.ne.s32.totalorder %s42, %s45
      %p51 = scmp.eq.s32.totalorder %s20, 0
      %p52 = por %p50, %p51
      %p53 = scmp.ne.s32.totalorder %s42, %s45
      %p54 = scmp.eq.s32.totalorder %s25, 3
      %p55 = por %p53, %p54
      %p56 = scmp.ne.s32.totalorder %s45, %s46
      %p57 = scmp.eq.s32.totalorder %s25, 0
      %p58 = por %p56, %p57
      %p59 = scmp.ne.s32.totalorder %s45, %s46
      %p60 = scmp.eq.s32.totalorder %s26, 3
      %p61 = por %p59, %p60
      %p63 = scmp.ne.s32.totalorder %s46, %s62
      %p64 = scmp.eq.s32.totalorder %s26, 0
      %p65 = por %p63, %p64
      %s67 = sadd.s32 %s66, 1
      %p70 = scmp.eq.s32.totalorder %s20, 3
      %p71 = scmp.ne.s32.totalorder %s66, %s68
      %p72 = scmp.eq.s32.totalorder %s20, 0
      %p73 = por %p71, %p72
      %p74 = scmp.ne.s32.totalorder %s66, %s68
      %p75 = scmp.eq.s32.totalorder %s25, 3
      %p76 = por %p74, %p75
      %p77 = scmp.ne.s32.totalorder %s68, %s69
      %p78 = scmp.eq.s32.totalorder %s25, 0
      %p79 = por %p77, %p78
      %p80 = scmp.ne.s32.totalorder %s68, %s69
      %p81 = scmp.eq.s32.totalorder %s26, 3
      %p82 = por %p80, %p81
      %p84 = scmp.ne.s32.totalorder %s69, %s83
      %p85 = scmp.eq.s32.totalorder %s26, 0
      %p86 = por %p84, %p85
      %s88 = sadd.s32 %s87, 1
      %p91 = scmp.eq.s32.totalorder %s20, 3
      %p92 = scmp.ne.s32.totalorder %s87, %s89
      %p93 = scmp.eq.s32.totalorder %s20, 0
      %p94 = por %p92, %p93
      %p95 = scmp.ne.s32.totalorder %s87, %s89
      %p96 = scmp.eq.s32.totalorder %s25, 3
      %p97 = por %p95, %p96
      %p98 = scmp.ne.s32.totalorder %s89, %s90
      %p99 = scmp.eq.s32.totalorder %s25, 0
      %p100 = por %p98, %p99
      %p101 = scmp.ne.s32.totalorder %s89, %s90
      %p102 = scmp.eq.s32.totalorder %s26, 3
      %p103 = por %p101, %p102
      %p105 = scmp.ne.s32.totalorder %s90, %s104
      %p106 = scmp.eq.s32.totalorder %s26, 0
      %p107 = por %p105, %p106
      %s109 = sadd.s32 %s108, 1
      %p112 = scmp.eq.s32.totalorder %s20, 3
      %p113 = scmp.ne.s32.totalorder %s108, %s110
      %p114 = scmp.eq.s32.totalorder %s20, 0
      %p115 = por %p113, %p114
      %p116 = scmp.ne.s32.totalorder %s108, %s110
      %p117 = scmp.eq.s32.totalorder %s25, 3
      %p118 = por %p116, %p117
      %p119 = scmp.ne.s32.totalorder %s110, %s111
      %p120 = scmp.eq.s32.totalorder %s25, 0
      %p121 = por %p119, %p120
      %p122 = scmp.ne.s32.totalorder %s110, %s111
      %p123 = scmp.eq.s32.totalorder %s26, 3
      %p124 = por %p122, %p123
      %p126 = scmp.ne.s32.totalorder %s111, %s125
      %p127 = scmp.eq.s32.totalorder %s26, 0
      %p128 = por %p126, %p127
      %s130 = sadd.s32 %s129, 1
      %p133 = scmp.eq.s32.totalorder %s20, 3
      %p134 = scmp.ne.s32.totalorder %s129, %s131
      %p135 = scmp.eq.s32.totalorder %s20, 0
      %p136 = por %p134, %p135
      %p137 = scmp.ne.s32.totalorder %s129, %s131
      %p138 = scmp.eq.s32.totalorder %s25, 3
      %p139 = por %p137, %p138
      %p140 = scmp.ne.s32.totalorder %s131, %s132
      %p141 = scmp.eq.s32.totalorder %s25, 0
      %p142 = por %p140, %p141
      %p143 = scmp.ne.s32.totalorder %s131, %s132
      %p144 = scmp.eq.s32.totalorder %s26, 3
      %p145 = por %p143, %p144
      %p147 = scmp.ne.s32.totalorder %s132, %s146
      %p148 = scmp.eq.s32.totalorder %s26, 0
      %p149 = por %p147, %p148
      %s151 = sadd.s32 %s150, 1
      %p154 = scmp.eq.s32.totalorder %s20, 3
      %p155 = scmp.ne.s32.totalorder %s150, %s152
      %p156 = scmp.eq.s32.totalorder %s20, 0
      %p157 = por %p155, %p156
      %p158 = scmp.ne.s32.totalorder %s150, %s152
      %p159 = scmp.eq.s32.totalorder %s25, 3
      %p160 = por %p158, %p159
      %p161 = scmp.ne.s32.totalorder %s152, %s153
      %p162 = scmp.eq.s32.totalorder %s25, 0
      %p163 = por %p161, %p162
      %p164 = scmp.ne.s32.totalorder %s152, %s153
      %p165 = scmp.eq.s32.totalorder %s26, 3
      %p166 = por %p164, %p165
      %p168 = scmp.ne.s32.totalorder %s153, %s167
      %p169 = scmp.eq.s32.totalorder %s26, 0
      %p170 = por %p168, %p169
      %s172 = sadd.s32 %s171, 1
      %p175 = scmp.eq.s32.totalorder %s20, 3
      %p176 = scmp.ne.s32.totalorder %s171, %s173
      %p177 = scmp.eq.s32.totalorder %s20, 0
      %p178 = por %p176, %p177
      %p179 = scmp.ne.s32.totalorder %s171, %s173
      %p180 = scmp.eq.s32.totalorder %s25, 3
      %p181 = por %p179, %p180
      %p182 = scmp.ne.s32.totalorder %s173, %s174
      %p183 = scmp.eq.s32.totalorder %s25, 0
      %p184 = por %p182, %p183
      %p185 = scmp.ne.s32.totalorder %s173, %s174
      %p186 = scmp.eq.s32.totalorder %s26, 3
      %p187 = por %p185, %p186
      %p189 = scmp.ne.s32.totalorder %s174, %s188
      %p190 = scmp.eq.s32.totalorder %s26, 0
      %p191 = por %p189, %p190
      %s193 = sadd.s32 %s192, 1
      %p196 = scmp.eq.s32.totalorder %s20, 3
      %p197 = scmp.ne.s32.totalorder %s192, %s194
      %p198 = scmp.eq.s32.totalorder %s20, 0
      %p199 = por %p197, %p198
      %p200 = scmp.ne.s32.totalorder %s192, %s194
      %p201 = scmp.eq.s32.totalorder %s25, 3
      %p202 = por %p200, %p201
      %p203 = scmp.ne.s32.totalorder %s194, %s195
      %p204 = scmp.eq.s32.totalorder %s25, 0
      %p205 = por %p203, %p204
      %p206 = scmp.ne.s32.totalorder %s194, %s195
      %p207 = scmp.eq.s32.totalorder %s26, 3
      %p208 = por %p206, %p207
      %p210 = scmp.ne.s32.totalorder %s195, %s209
      %p211 = scmp.eq.s32.totalorder %s26, 0
      %p212 = por %p210, %p211
      %s214 = sadd.s32 %s213, 1
      %p217 = scmp.eq.s32.totalorder %s20, 3
      %p218 = scmp.ne.s32.totalorder %s213, %s215
      %p219 = scmp.eq.s32.totalorder %s20, 0
      %p220 = por %p218, %p219
      %p221 = scmp.ne.s32.totalorder %s213, %s215
      %p222 = scmp.eq.s32.totalorder %s25, 3
      %p223 = por %p221, %p222
      %p224 = scmp.ne.s32.totalorder %s215, %s216
      %p225 = scmp.eq.s32.totalorder %s25, 0
      %p226 = por %p224, %p225
      %p227 = scmp.ne.s32.totalorder %s215, %s216
      %p228 = scmp.eq.s32.totalorder %s26, 3
      %p229 = por %p227, %p228
      %p231 = scmp.ne.s32.totalorder %s216, %s230
      %p232 = scmp.eq.s32.totalorder %s26, 0
      %p233 = por %p231, %p232
      %s235 = sadd.s32 %s234, 1
      %p238 = scmp.eq.s32.totalorder %s20, 3
      %p239 = scmp.ne.s32.totalorder %s234, %s236
      %p240 = scmp.eq.s32.totalorder %s20, 0
      %p241 = por %p239, %p240
      %p242 = scmp.ne.s32.totalorder %s234, %s236
      %p243 = scmp.eq.s32.totalorder %s25, 3
      %p244 = por %p242, %p243
      %p245 = scmp.ne.s32.totalorder %s236, %s237
      %p246 = scmp.eq.s32.totalorder %s25, 0
      %p247 = por %p245, %p246
      %p248 = scmp.ne.s32.totalorder %s236, %s237
      %p249 = scmp.eq.s32.totalorder %s26, 3
      %p250 = por %p248, %p249
      %p252 = scmp.ne.s32.totalorder %s237, %s251
      %p253 = scmp.eq.s32.totalorder %s26, 0
      %p254 = por %p252, %p253
      %s256 = sadd.s32 %s255, 1
      %p259 = scmp.eq.s32.totalorder %s20, 3
      %p260 = scmp.ne.s32.totalorder %s255, %s257
      %p261 = scmp.eq.s32.totalorder %s20, 0
      %p262 = por %p260, %p261
      %p263 = scmp.ne.s32.totalorder %s255, %s257
      %p264 = scmp.eq.s32.totalorder %s25, 3
      %p265 = por %p263, %p264
      %p266 = scmp.ne.s32.totalorder %s257, %s258
      %p267 = scmp.eq.s32.totalorder %s25, 0
      %p268 = por %p266, %p267
      %p269 = scmp.ne.s32.totalorder %s257, %s258
      %p270 = scmp.eq.s32.totalorder %s26, 3
      %p271 = por %p269, %p270
      %p273 = scmp.ne.s32.totalorder %s258, %s272
      %p274 = scmp.eq.s32.totalorder %s26, 0
      %p275 = por %p273, %p274
      %s276 = ssub.s32 %s27, %s39
      %s277 = ssub.s32 %s28, %s35
      %s278 = sor.u32 %s276, %s277
      %p279 = scmp.eq.s32.totalorder %s278, 0
      %s281 = sadd.s32 %s280, 1
      %s282 = scalar_select %p279, %s280, %s281
      %p285 = pneg %p279
      %p286 = scmp.eq.s32.totalorder %s20, 3
      %p287 = por %p285, %p286
      %p288 = scmp.ne.s32.totalorder %s280, %s283
      %p289 = scmp.eq.s32.totalorder %s20, 0
      %p290 = por %p288, %p289
      %p291 = scmp.ne.s32.totalorder %s280, %s283
      %p292 = scmp.eq.s32.totalorder %s25, 3
      %p293 = por %p291, %p292
      %p294 = scmp.ne.s32.totalorder %s283, %s284
      %p295 = scmp.eq.s32.totalorder %s25, 0
      %p296 = por %p294, %p295
      %p297 = scmp.ne.s32.totalorder %s283, %s284
      %p298 = scmp.eq.s32.totalorder %s26, 3
      %p299 = por %p297, %p298
      %p301 = scmp.ne.s32.totalorder %s284, %s300
      %p302 = scmp.eq.s32.totalorder %s26, 0
      %p303 = por %p301, %p302
      %p304 = scmp.le.s32.totalorder 1, %s20
      %p305 = scmp.lt.s32.totalorder %s20, 5
      %p306 = pnand %p304, %p305
      %p307 = pneg %p306
      // Predicated region
      $region9: #{tpu_custom_call.1} parent=5 // pred_check
        _
      $region10: #{tpu_custom_call.1} parent=5 // pred_check_branch
        %309 = sbr.rel (%p306) target = $region12
      $region11: #{tpu_custom_call.1} parent=5 // pred_region
        %s310 = ssub.s32 %s20, 1
        // Predicated region
        $region13: #{tpu_custom_call.1} parent=11 // pred_check
          %p311 = pneg %p79
        $region14: #{tpu_custom_call.1} parent=11 // pred_check_branch
          %313 = sbr.rel (%p311) target = $region16
        $region15: #{tpu_custom_call.1} parent=11 // pred_region
          _
        $region16: #{tpu_custom_call.1} parent=11 // pred_fallthru
          _
        // Predicated region
        $region17: #{tpu_custom_call.1} parent=11 // pred_check
          %p314 = pneg %p100
        $region18: #{tpu_custom_call.1} parent=11 // pred_check_branch
          %316 = sbr.rel (%p314) target = $region20
        $region19: #{tpu_custom_call.1} parent=11 // pred_region
          _
        $region20: #{tpu_custom_call.1} parent=11 // pred_fallthru
          _
        // Predicated region
        $region21: #{tpu_custom_call.1} parent=11 // pred_check
          %p317 = pneg %p121
        $region22: #{tpu_custom_call.1} parent=11 // pred_check_branch
          %319 = sbr.rel (%p317) target = $region24
        $region23: #{tpu_custom_call.1} parent=11 // pred_region
          _
        $region24: #{tpu_custom_call.1} parent=11 // pred_fallthru
          _
        // Predicated region
        $region25: #{tpu_custom_call.1} parent=11 // pred_check
          %p320 = pneg %p142
        $region26: #{tpu_custom_call.1} parent=11 // pred_check_branch
          %322 = sbr.rel (%p320) target = $region28
        $region27: #{tpu_custom_call.1} parent=11 // pred_region
          _
        $region28: #{tpu_custom_call.1} parent=11 // pred_fallthru
          _
        // Predicated region
        $region29: #{tpu_custom_call.1} parent=11 // pred_check
          %p323 = pneg %p163
        $region30: #{tpu_custom_call.1} parent=11 // pred_check_branch
          %325 = sbr.rel (%p323) target = $region32
        $region31: #{tpu_custom_call.1} parent=11 // pred_region
          _
        $region32: #{tpu_custom_call.1} parent=11 // pred_fallthru
          _
        // Predicated region
        $region33: #{tpu_custom_call.1} parent=11 // pred_check
          %p326 = pneg %p184
        $region34: #{tpu_custom_call.1} parent=11 // pred_check_branch
          %328 = sbr.rel (%p326) target = $region36
        $region35: #{tpu_custom_call.1} parent=11 // pred_region
          _
        $region36: #{tpu_custom_call.1} parent=11 // pred_fallthru
          _
        // Predicated region
        $region37: #{tpu_custom_call.1} parent=11 // pred_check
          %p329 = pneg %p205
        $region38: #{tpu_custom_call.1} parent=11 // pred_check_branch
          %331 = sbr.rel (%p329) target = $region40
        $region39: #{tpu_custom_call.1} parent=11 // pred_region
          _
        $region40: #{tpu_custom_call.1} parent=11 // pred_fallthru
          _
        // Predicated region
        $region41: #{tpu_custom_call.1} parent=11 // pred_check
          %p332 = pneg %p226
        $region42: #{tpu_custom_call.1} parent=11 // pred_check_branch
          %334 = sbr.rel (%p332) target = $region44
        $region43: #{tpu_custom_call.1} parent=11 // pred_region
          _
        $region44: #{tpu_custom_call.1} parent=11 // pred_fallthru
          _
        // Predicated region
        $region45: #{tpu_custom_call.1} parent=11 // pred_check
          %p335 = pneg %p247
        $region46: #{tpu_custom_call.1} parent=11 // pred_check_branch
          %337 = sbr.rel (%p335) target = $region48
        $region47: #{tpu_custom_call.1} parent=11 // pred_region
          _
        $region48: #{tpu_custom_call.1} parent=11 // pred_fallthru
          _
        // Predicated region
        $region49: #{tpu_custom_call.1} parent=11 // pred_check
          %p338 = pneg %p268
        $region50: #{tpu_custom_call.1} parent=11 // pred_check_branch
          %340 = sbr.rel (%p338) target = $region52
        $region51: #{tpu_custom_call.1} parent=11 // pred_region
          _
        $region52: #{tpu_custom_call.1} parent=11 // pred_fallthru
          _
      $region12: #{tpu_custom_call.1} parent=5 // pred_fallthru
        _
      %p341 = scmp.lt.s32.totalorder %s20, 4
      // Predicated region
      $region53: #{tpu_custom_call.1} parent=5 // pred_check
        %p342 = pneg %p341
      $region54: #{tpu_custom_call.1} parent=5 // pred_check_branch
        %344 = sbr.rel (%p342) target = $region56
      $region55: #{tpu_custom_call.1} parent=5 // pred_region
        // Predicated region
        $region57: #{tpu_custom_call.1} parent=55 // pred_check
          %p345 = pneg %p52
        $region58: #{tpu_custom_call.1} parent=55 // pred_check_branch
          %347 = sbr.rel (%p345) target = $region60
        $region59: #{tpu_custom_call.1} parent=55 // pred_region
          %p348 = scmp.lt.s32.totalorder %s27, 1
          %s349 = scalar_select %p348, %s27, 1
          %s350 = smul.addr %s349, 2
          %s351 = smul.addr %s350, 8
          %s352 = scalar_lea.vmem %s0, %s351
        $region60: #{tpu_custom_call.1} parent=55 // pred_fallthru
          _
      $region56: #{tpu_custom_call.1} parent=5 // pred_fallthru
        _
      %p353 = scmp.le.s32.totalorder 1, %s20
      %p354 = scmp.lt.s32.totalorder %s20, 5
      %p355 = pnand %p353, %p354
      %p356 = pneg %p355
      // Predicated region
      $region61: #{tpu_custom_call.1} parent=5 // pred_check
        _
      $region62: #{tpu_custom_call.1} parent=5 // pred_check_branch
        %358 = sbr.rel (%p355) target = $region64
      $region63: #{tpu_custom_call.1} parent=5 // pred_region
        %s359 = ssub.s32 %s20, 1
        %p360 = scmp.lt.s32.totalorder %s29, 1
        %s361 = scalar_select %p360, %s29, 1
        %s362 = smul.addr %s361, 2
        %s363 = smul.addr %s362, 8
        %s364 = scalar_lea.vmem %s0, %s363
        %p365 = pneg %p58
        %p366 = pneg %p55
        %p367 = pneg %p79
        %p368 = pneg %p76
        %p369 = pneg %p100
        %p370 = pneg %p97
        %p371 = pneg %p121
        %p372 = pneg %p118
        %p373 = pneg %p142
        %p374 = pneg %p139
        %p375 = pneg %p163
        %p376 = pneg %p160
        %p377 = pneg %p184
        %p378 = pneg %p181
        %p379 = pneg %p205
        %p380 = pneg %p202
        %p381 = pneg %p226
        %p382 = pneg %p223
        %p383 = pneg %p247
        %p384 = pneg %p244
        %p385 = pneg %p268
        %p386 = pneg %p265
        %p387 = pneg %p296
        %p388 = pneg %p293
        %s389 = sand.u32 %s283, 1
        %s390 = scalar_lea.sflag [#allocation7], %s389
        %s391 = sand.u32 %s283, 1
        %s392 = smul.addr %s391, 8
        %s393 = scalar_lea.vmem [#allocation6], %s392
        %p394 = scmp.lt.s32.totalorder %s29, 1
        %s395 = scalar_select %p394, %s29, 1
        %s396 = smul.addr %s395, 2
        %s397 = smul.addr %s396, 8
        %s398 = scalar_lea.vmem %s0, %s397
        %p399 = scmp.eq.s32.totalorder %s30, 0
        // Predicated region
        $region65: #{tpu_custom_call.1} parent=63 // pred_check
          %p400 = pneg %p399
        $region66: #{tpu_custom_call.1} parent=63 // pred_check_branch
          %402 = sbr.rel (%p400) target = $region68
        $region67: #{tpu_custom_call.1} parent=63 // pred_region
          %v403 = vld [vmem:[%s398] sm:$0xff]
          %v404 = vld [vmem:[%s398 + $0x8] sm:$0xff]
          %v405 = vld [vmem:[%s1] sm:$0x1]
          %v406 = vld [vmem:[%s2] sm:$0x1]
          %vm407 = vcmask 261120
          %v408 = vsel %vm407, %v403, 0.0
          %409 = vadd.xlane.f32.xlu0 %v408
          %v410 = vpop.xlane.xlu0 %409
          %v411 = vsel %vm407, %v404, 0.0
          %412 = vadd.xlane.f32.xlu0 %v411
          %v413 = vpop.xlane.xlu0 %412
          %v414 = vrcp.pop 32.0
          %v415 = vmul.f32 %v410, %v414
          %v416 = vmul.f32 %v413, %v414
          %v417 = vsub.f32 %v403, %v415
          %v418 = vsub.f32 %v404, %v416
          %v419 = vmul.f32 %v417, %v417
          %v420 = vmul.f32 %v418, %v418
          %v421 = vsel %vm407, %v419, 0.0
          %422 = vadd.xlane.f32.xlu0 %v421
          %v423 = vpop.xlane.xlu0 %422
          %v424 = vsel %vm407, %v420, 0.0
          %425 = vadd.xlane.f32.xlu0 %v424
          %v426 = vpop.xlane.xlu0 %425
          %v427 = vmul.f32 %v423, 0.032258064
          %v428 = vmul.f32 %v426, 0.032258064
          %v429 = vrsqrt.pop %v427
          %v430 = vmul.f32 %v427, %v429
          %vm431 = vcmp.eq.f32.partialorder %v427, inf
          %v432 = vsel %vm431, %v427, %v430
          %vm433 = vcmp.eq.f32.partialorder %v427, 0.0
          %v434 = vand.u32 %v427, 2147483648
          %v435 = vsel %vm433, %v434, %v432
          %v436 = vrsqrt.pop %v428
          %v437 = vmul.f32 %v428, %v436
          %vm438 = vcmp.eq.f32.partialorder %v428, inf
          %v439 = vsel %vm438, %v428, %v437
          %vm440 = vcmp.eq.f32.partialorder %v428, 0.0
          %v441 = vand.u32 %v428, 2147483648
          %v442 = vsel %vm440, %v441, %v439
          %v443 = vadd.f32 %v435, 1e-06
          %v444 = vadd.f32 %v442, 1e-06
          %v445 = vrcp.pop %v443
          %v446 = vmul.f32 %v417, %v445
          %v447 = vrcp.pop %v444
          %v448 = vmul.f32 %v418, %v447
          %v450 = vlaneseq
          %v451 = vshrl.u32 %v450, 7
          %v452 = vsub.s32 0, %v451
          %v453 = vrot.slane %v405, %v452
          %v455 = vmul.f32 %v453, %v446
          %v456 = vmul.f32 %v453, %v448
          %v458 = vlaneseq
          %v459 = vshrl.u32 %v458, 7
          %v460 = vsub.s32 0, %v459
          %v461 = vrot.slane %v406, %v460
          %v463 = vadd.f32 %v455, %v461
          %v464 = vadd.f32 %v456, %v461
          %v465 = vld [vmem:[%s3] sm:$0xff]
          %v466 = vld [vmem:[%s3 + $0x8] sm:$0xff]
          %v467 = vld [vmem:[%s3 + $0x10] sm:$0xff]
          %v468 = vld [vmem:[%s3 + $0x18] sm:$0xff]
          %v470 = vsel %vm407, %v463, 0
          %v473 = vsel %vm407, %v464, 0
          %475 = vmatprep.subr.mxu0 0.0
          %476 = vmatpush1.msra.mxu0 %v465
          %477 = vmatprep.subr.mxu0 0.0
          %478 = vmatpush1.msra.mxu0 %v466
          %479 = vmatprep.subr.mxu0 0.0
          %480 = vmatpush1.msra.mxu0 %v467
          %481 = vmatprep.subr.mxu0 0.0
          %482 = vmatpush1.msra.mxu0 %v468
          %483 = vmatprep.subr.mxu0 0.0
          %484 = vmatpush1.msra.mxu0 0.0
          %485 = vmatprep.subr.mxu0 0.0
          %486 = vmatpush1.msra.mxu0 0.0
          %487 = vmatprep.subr.mxu0 0.0
          %488 = vmatpush1.msra.mxu0 0.0
          %489 = vmatprep.subr.mxu0 0.0
          %490 = vmatpush1.msra.mxu0 0.0
          %491 = vmatprep.subr.mxu0 0.0
          %492 = vmatpush1.msra.mxu0 0.0
          %493 = vmatprep.subr.mxu0 0.0
          %494 = vmatpush1.msra.mxu0 0.0
          %495 = vmatprep.subr.mxu0 0.0
          %496 = vmatpush1.msra.mxu0 0.0
          %497 = vmatprep.subr.mxu0 0.0
          %498 = vmatpush1.msra.mxu0 0.0
          %499 = vmatprep.subr.mxu0 0.0
          %500 = vmatpush1.msra.mxu0 0.0
          %501 = vmatprep.subr.mxu0 0.0
          %502 = vmatpush1.msra.mxu0 0.0
          %503 = vmatprep.subr.mxu0 0.0
          %504 = vmatpush1.msra.mxu0 0.0
          %505 = vmatprep.subr.mxu0 0.0
          %506 = vmatpush1.msra.mxu0 0.0
          %507 = vmatprep.subr.mxu0 0.0
          %508 = vmatpush1.msra.mxu0 0.0
          %509 = vmatprep.subr.mxu0 0.0
          %510 = vmatpush1.msra.mxu0 0.0
          %511 = vmatprep.subr.mxu0 0.0
          %512 = vmatpush1.msra.mxu0 0.0
          %513 = vmatprep.subr.mxu0 0.0
          %514 = vmatpush1.msra.mxu0 0.0
          %515 = vmatprep.subr.mxu0 0.0
          %516 = vmatpush1.msra.mxu0 0.0
          %517 = vmatprep.subr.mxu0 0.0
          %518 = vmatpush1.msra.mxu0 0.0
          %519 = vmatprep.subr.mxu0 0.0
          %520 = vmatpush1.msra.mxu0 0.0
          %521 = vmatprep.subr.mxu0 0.0
          %522 = vmatpush1.msra.mxu0 0.0
          %523 = vmatprep.subr.mxu0 0.0
          %524 = vmatpush1.msra.mxu0 0.0
          %525 = vmatprep.subr.mxu0 0.0
          %526 = vmatpush1.msra.mxu0 0.0
          %527 = vmatprep.subr.mxu0 0.0
          %528 = vmatpush1.msra.mxu0 0.0
          %529 = vmatprep.subr.mxu0 0.0
          %530 = vmatpush1.msra.mxu0 0.0
          %531 = vmatprep.subr.mxu0 0.0
          %532 = vmatpush1.msra.mxu0 0.0
          %533 = vmatprep.subr.mxu0 0.0
          %534 = vmatpush1.msra.mxu0 0.0
          %535 = vmatprep.subr.mxu0 0.0
          %536 = vmatpush1.msra.mxu0 0.0
          %537 = vmatprep.subr.mxu0 0.0
          %538 = vmatpush1.msra.mxu0 0.0
          %539 = vmatprep.mubr.f32.mxu0 0.0
          %540 = vmatmul.mubr.f32.gmra.mrb[0].mxu0 %v470
          %v541 = vpop.f32.mrb[0].mxu0
          %v542 = vadd.f32 0.0, %v541
          %v543 = vpop.f32.mrb[0].mxu0
          %544 = vmatprep.mubr.f32.mxu0 0.0
          %545 = vmatmul.mubr.f32.gmra.mrb[0].mxu0 %v473
          %v546 = vpop.f32.mrb[0].mxu0
          %v547 = vadd.f32 0.0, %v546
          %v548 = vpop.f32.mrb[0].mxu0
          %549 = vdwg.mxu0
          %550 = vst.msk [vmem:[#allocation2] sm:$0xff] %vm407, 0.0
          %551 = vst.msk [vmem:[#allocation2 + $0x8] sm:$0xff] %vm407, %v403
          %552 = vst.msk [vmem:[#allocation2 + $0x10] sm:$0xff] %vm407, %v404
          %553 = vst.msk [vmem:[#allocation2 + $0x18] sm:$0xff] %vm407, 0.0
          %v554 = vmul.f32 %v542, 0.35355338
          %v555 = vmul.f32 %v547, 0.35355338
          %556 = vst.msk [vmem:[#allocation3] sm:$0xff] %vm407, 0.0
          %557 = vst.msk [vmem:[#allocation3 + $0x8] sm:$0xff] %vm407, %v554
          %558 = vst.msk [vmem:[#allocation3 + $0x10] sm:$0xff] %vm407, %v555
          %559 = vst.msk [vmem:[#allocation3 + $0x18] sm:$0xff] %vm407, 0.0
          %562 = vrot.lane.b32.xlu0 %v542, 96
          %v563 = vpop.permute.xlu0 %562
          %564 = vrot.lane.b32.xlu0 %v547, 96
          %v565 = vpop.permute.xlu0 %564
          %568 = vst.msk [vmem:[#allocation4] sm:$0xff] %vm407, %v563
          %569 = vst.msk [vmem:[#allocation4 + $0x8] sm:$0xff] %vm407, %v565
          %570 = vrot.lane.b32.xlu0 %v542, 64
          %v571 = vpop.permute.xlu0 %570
          %572 = vrot.lane.b32.xlu0 %v547, 64
          %v573 = vpop.permute.xlu0 %572
          %576 = vst.msk [vmem:[#allocation5] sm:$0xff] %vm407, %v571
          %577 = vst.msk [vmem:[#allocation5 + $0x8] sm:$0xff] %vm407, %v573
        $region68: #{tpu_custom_call.1} parent=63 // pred_fallthru
          _
        %s578 = smul.u32 %s30, 8
        %s579 = scalar_lea.vmem [#allocation3], %s578
        %v580 = vld [vmem:[%s579] sm:$0xff]
        %v581 = vld [vmem:[%s579 + $0x8] sm:$0xff]
        %v582 = vld [vmem:[%s579 + $0x10] sm:$0xff]
        %v583 = vld [vmem:[#allocation4] sm:$0xff]
        %v584 = vld [vmem:[#allocation4 + $0x8] sm:$0xff]
        %v585 = vld [vmem:[#allocation5] sm:$0xff]
        %v586 = vld [vmem:[#allocation5 + $0x8] sm:$0xff]
        %vm587 = vcmask 64512
        %v589 = vsel %vm587, %v580, 0
        %v592 = vsel %vm587, %v581, 0
        %v595 = vsel %vm587, %v582, 0
        %v598 = vsel %vm587, %v583, 0
        %v601 = vsel %vm587, %v584, 0
        %603 = vmatprep.subr.mxu0 0.0
        %604 = vmatpush1.xpose.msra.mxu0 %v598
        %605 = vmatprep.subr.mxu0 0.0
        %606 = vmatpush1.xpose.msra.mxu0 %v601
        %607 = vmatprep.subr.mxu0 0.0
        %608 = vmatpush1.xpose.msra.mxu0 0.0
        %609 = vmatprep.subr.mxu0 0.0
        %610 = vmatpush1.xpose.msra.mxu0 0.0
        %611 = vmatprep.subr.mxu0 0.0
        %612 = vmatpush1.xpose.msra.mxu0 0.0
        %613 = vmatprep.subr.mxu0 0.0
        %614 = vmatpush1.xpose.msra.mxu0 0.0
        %615 = vmatprep.subr.mxu0 0.0
        %616 = vmatpush1.xpose.msra.mxu0 0.0
        %617 = vmatprep.subr.mxu0 0.0
        %618 = vmatpush1.xpose.msra.mxu0 0.0
        %619 = vmatprep.subr.mxu0 0.0
        %620 = vmatpush1.xpose.msra.mxu0 0.0
        %621 = vmatprep.subr.mxu0 0.0
        %622 = vmatpush1.xpose.msra.mxu0 0.0
        %623 = vmatprep.subr.mxu0 0.0
        %624 = vmatpush1.xpose.msra.mxu0 0.0
        %625 = vmatprep.subr.mxu0 0.0
        %626 = vmatpush1.xpose.msra.mxu0 0.0
        %627 = vmatprep.subr.mxu0 0.0
        %628 = vmatpush1.xpose.msra.mxu0 0.0
        %629 = vmatprep.subr.mxu0 0.0
        %630 = vmatpush1.xpose.msra.mxu0 0.0
        %631 = vmatprep.subr.mxu0 0.0
        %632 = vmatpush1.xpose.msra.mxu0 0.0
        %633 = vmatprep.subr.mxu0 0.0
        %634 = vmatpush1.xpose.msra.mxu0 0.0
        %635 = vmatprep.subr.mxu0 0.0
        %636 = vmatpush1.xpose.msra.mxu0 0.0
        %637 = vmatprep.subr.mxu0 0.0
        %638 = vmatpush1.xpose.msra.mxu0 0.0
        %639 = vmatprep.subr.mxu0 0.0
        %640 = vmatpush1.xpose.msra.mxu0 0.0
        %641 = vmatprep.subr.mxu0 0.0
        %642 = vmatpush1.xpose.msra.mxu0 0.0
        %643 = vmatprep.subr.mxu0 0.0
        %644 = vmatpush1.xpose.msra.mxu0 0.0
        %645 = vmatprep.subr.mxu0 0.0
        %646 = vmatpush1.xpose.msra.mxu0 0.0
        %647 = vmatprep.subr.mxu0 0.0
        %648 = vmatpush1.xpose.msra.mxu0 0.0
        %649 = vmatprep.subr.mxu0 0.0
        %650 = vmatpush1.xpose.msra.mxu0 0.0
        %651 = vmatprep.subr.mxu0 0.0
        %652 = vmatpush1.xpose.msra.mxu0 0.0
        %653 = vmatprep.subr.mxu0 0.0
        %654 = vmatpush1.xpose.msra.mxu0 0.0
        %655 = vmatprep.subr.mxu0 0.0
        %656 = vmatpush1.xpose.msra.mxu0 0.0
        %657 = vmatprep.subr.mxu0 0.0
        %658 = vmatpush1.xpose.msra.mxu0 0.0
        %659 = vmatprep.subr.mxu0 0.0
        %660 = vmatpush1.xpose.msra.mxu0 0.0
        %661 = vmatprep.subr.mxu0 0.0
        %662 = vmatpush1.xpose.msra.mxu0 0.0
        %663 = vmatprep.subr.mxu0 0.0
        %664 = vmatpush1.xpose.msra.mxu0 0.0
        %665 = vmatprep.subr.mxu0 0.0
        %666 = vmatpush1.xpose.msra.mxu0 0.0
        %667 = vmatprep.mubr.f32.mxu0 0.0
        %668 = vmatmul.mubr.f32.gmra.mrb[0].mxu0 %v589
        %v669 = vpop.f32.mrb[0].mxu0
        %v670 = vadd.f32 0.0, %v669
        %v671 = vpop.f32.mrb[0].mxu0
        %672 = vmatprep.mubr.f32.mxu0 0.0
        %673 = vmatmul.mubr.f32.gmra.mrb[0].mxu0 %v592
        %v674 = vpop.f32.mrb[0].mxu0
        %v675 = vadd.f32 0.0, %v674
        %v676 = vpop.f32.mrb[0].mxu0
        %677 = vmatprep.mubr.f32.mxu0 0.0
        %678 = vmatmul.mubr.f32.gmra.mrb[0].mxu0 %v595
        %v679 = vpop.f32.mrb[0].mxu0
        %v680 = vadd.f32 0.0, %v679
        %v681 = vpop.f32.mrb[0].mxu0
        %682 = vdwg.mxu0
        %vm683 = vcmask 130048
        %v684 = vsel %vm683, %v670, -inf
        %685 = vmax.xlane.f32.xlu0 %v684
        %v686 = vpop.xlane.xlu0 %685
        %v687 = vsel %vm683, %v675, -inf
        %688 = vmax.xlane.f32.xlu0 %v687
        %v689 = vpop.xlane.xlu0 %688
        %v690 = vsel %vm683, %v680, -inf
        %691 = vmax.xlane.f32.xlu0 %v690
        %v692 = vpop.xlane.xlu0 %691
        %v693 = vsub.f32 %v670, %v686
        %v694 = vsub.f32 %v675, %v689
        %v695 = vsub.f32 %v680, %v692
        %v696 = vmul.f32 %v693, 1.442695
        %v697 = vpow.pop %v696
        %v698 = vmul.f32 %v694, 1.442695
        %v699 = vpow.pop %v698
        %v700 = vmul.f32 %v695, 1.442695
        %v701 = vpow.pop %v700
        %v702 = vsel %vm683, %v697, 0.0
        %703 = vadd.xlane.f32.xlu0 %v702
        %v704 = vpop.xlane.xlu0 %703
        %v705 = vsel %vm683, %v699, 0.0
        %706 = vadd.xlane.f32.xlu0 %v705
        %v707 = vpop.xlane.xlu0 %706
        %v708 = vsel %vm683, %v701, 0.0
        %709 = vadd.xlane.f32.xlu0 %v708
        %v710 = vpop.xlane.xlu0 %709
        %v712 = vsel %vm683, %v697, 0
        %v715 = vsel %vm683, %v699, 0
        %v718 = vsel %vm683, %v701, 0
        %720 = vmatprep.subr.mxu0 0.0
        %721 = vmatpush1.msra.mxu0 %v585
        %722 = vmatprep.subr.mxu0 0.0
        %723 = vmatpush1.msra.mxu0 %v586
        %724 = vmatprep.subr.mxu0 0.0
        %725 = vmatpush1.msra.mxu0 0.0
        %726 = vmatprep.subr.mxu0 0.0
        %727 = vmatpush1.msra.mxu0 0.0
        %728 = vmatprep.subr.mxu0 0.0
        %729 = vmatpush1.msra.mxu0 0.0
        %730 = vmatprep.subr.mxu0 0.0
        %731 = vmatpush1.msra.mxu0 0.0
        %732 = vmatprep.subr.mxu0 0.0
        %733 = vmatpush1.msra.mxu0 0.0
        %734 = vmatprep.subr.mxu0 0.0
        %735 = vmatpush1.msra.mxu0 0.0
        %736 = vmatprep.subr.mxu0 0.0
        %737 = vmatpush1.msra.mxu0 0.0
        %738 = vmatprep.subr.mxu0 0.0
        %739 = vmatpush1.msra.mxu0 0.0
        %740 = vmatprep.subr.mxu0 0.0
        %741 = vmatpush1.msra.mxu0 0.0
        %742 = vmatprep.subr.mxu0 0.0
        %743 = vmatpush1.msra.mxu0 0.0
        %744 = vmatprep.subr.mxu0 0.0
        %745 = vmatpush1.msra.mxu0 0.0
        %746 = vmatprep.subr.mxu0 0.0
        %747 = vmatpush1.msra.mxu0 0.0
        %748 = vmatprep.subr.mxu0 0.0
        %749 = vmatpush1.msra.mxu0 0.0
        %750 = vmatprep.subr.mxu0 0.0
        %751 = vmatpush1.msra.mxu0 0.0
        %752 = vmatprep.subr.mxu0 0.0
        %753 = vmatpush1.msra.mxu0 0.0
        %754 = vmatprep.subr.mxu0 0.0
        %755 = vmatpush1.msra.mxu0 0.0
        %756 = vmatprep.subr.mxu0 0.0
        %757 = vmatpush1.msra.mxu0 0.0
        %758 = vmatprep.subr.mxu0 0.0
        %759 = vmatpush1.msra.mxu0 0.0
        %760 = vmatprep.subr.mxu0 0.0
        %761 = vmatpush1.msra.mxu0 0.0
        %762 = vmatprep.subr.mxu0 0.0
        %763 = vmatpush1.msra.mxu0 0.0
        %764 = vmatprep.subr.mxu0 0.0
        %765 = vmatpush1.msra.mxu0 0.0
        %766 = vmatprep.subr.mxu0 0.0
        %767 = vmatpush1.msra.mxu0 0.0
        %768 = vmatprep.subr.mxu0 0.0
        %769 = vmatpush1.msra.mxu0 0.0
        %770 = vmatprep.subr.mxu0 0.0
        %771 = vmatpush1.msra.mxu0 0.0
        %772 = vmatprep.subr.mxu0 0.0
        %773 = vmatpush1.msra.mxu0 0.0
        %774 = vmatprep.subr.mxu0 0.0
        %775 = vmatpush1.msra.mxu0 0.0
        %776 = vmatprep.subr.mxu0 0.0
        %777 = vmatpush1.msra.mxu0 0.0
        %778 = vmatprep.subr.mxu0 0.0
        %779 = vmatpush1.msra.mxu0 0.0
        %780 = vmatprep.subr.mxu0 0.0
        %781 = vmatpush1.msra.mxu0 0.0
        %782 = vmatprep.subr.mxu0 0.0
        %783 = vmatpush1.msra.mxu0 0.0
        %784 = vmatprep.mubr.f32.mxu0 0.0
        %785 = vmatmul.mubr.f32.gmra.mrb[0].mxu0 %v712
        %v786 = vpop.f32.mrb[0].mxu0
        %v787 = vadd.f32 0.0, %v786
        %v788 = vpop.f32.mrb[0].mxu0
        %789 = vmatprep.mubr.f32.mxu0 0.0
        %790 = vmatmul.mubr.f32.gmra.mrb[0].mxu0 %v715
        %v791 = vpop.f32.mrb[0].mxu0
        %v792 = vadd.f32 0.0, %v791
        %v793 = vpop.f32.mrb[0].mxu0
        %794 = vmatprep.mubr.f32.mxu0 0.0
        %795 = vmatmul.mubr.f32.gmra.mrb[0].mxu0 %v718
        %v796 = vpop.f32.mrb[0].mxu0
        %v797 = vadd.f32 0.0, %v796
        %v798 = vpop.f32.mrb[0].mxu0
        %799 = vdwg.mxu0
        %v800 = vrcp.pop %v704
        %v801 = vmul.f32 %v787, %v800
        %v802 = vrcp.pop %v707
        %v803 = vmul.f32 %v792, %v802
        %v804 = vrcp.pop %v710
        %v805 = vmul.f32 %v797, %v804
        %806 = vrot.lane.b32.xlu0 %v580, 120
        %v807 = vpop.permute.xlu0 %806
        %808 = vrot.lane.b32.xlu0 %v581, 120
        %v809 = vpop.permute.xlu0 %808
        %810 = vrot.lane.b32.xlu0 %v582, 120
        %v811 = vpop.permute.xlu0 %810
        %812 = vrot.lane.b32.xlu0 %v583, 120
        %v813 = vpop.permute.xlu0 %812
        %814 = vrot.lane.b32.xlu0 %v584, 120
        %v815 = vpop.permute.xlu0 %814
        %v816 = vsel %vm587, %v807, 0
        %v818 = vsel %vm587, %v809, 0
        %v820 = vsel %vm587, %v811, 0
        %v822 = vsel %vm587, %v813, 0
        %v824 = vsel %vm587, %v815, 0
        %826 = vmatprep.subr.mxu0 0.0
        %827 = vmatpush1.xpose.msra.mxu0 %v822
        %828 = vmatprep.subr.mxu0 0.0
        %829 = vmatpush1.xpose.msra.mxu0 %v824
        %830 = vmatprep.subr.mxu0 0.0
        %831 = vmatpush1.xpose.msra.mxu0 0.0
        %832 = vmatprep.subr.mxu0 0.0
        %833 = vmatpush1.xpose.msra.mxu0 0.0
        %834 = vmatprep.subr.mxu0 0.0
        %835 = vmatpush1.xpose.msra.mxu0 0.0
        %836 = vmatprep.subr.mxu0 0.0
        %837 = vmatpush1.xpose.msra.mxu0 0.0
        %838 = vmatprep.subr.mxu0 0.0
        %839 = vmatpush1.xpose.msra.mxu0 0.0
        %840 = vmatprep.subr.mxu0 0.0
        %841 = vmatpush1.xpose.msra.mxu0 0.0
        %842 = vmatprep.subr.mxu0 0.0
        %843 = vmatpush1.xpose.msra.mxu0 0.0
        %844 = vmatprep.subr.mxu0 0.0
        %845 = vmatpush1.xpose.msra.mxu0 0.0
        %846 = vmatprep.subr.mxu0 0.0
        %847 = vmatpush1.xpose.msra.mxu0 0.0
        %848 = vmatprep.subr.mxu0 0.0
        %849 = vmatpush1.xpose.msra.mxu0 0.0
        %850 = vmatprep.subr.mxu0 0.0
        %851 = vmatpush1.xpose.msra.mxu0 0.0
        %852 = vmatprep.subr.mxu0 0.0
        %853 = vmatpush1.xpose.msra.mxu0 0.0
        %854 = vmatprep.subr.mxu0 0.0
        %855 = vmatpush1.xpose.msra.mxu0 0.0
        %856 = vmatprep.subr.mxu0 0.0
        %857 = vmatpush1.xpose.msra.mxu0 0.0
        %858 = vmatprep.subr.mxu0 0.0
        %859 = vmatpush1.xpose.msra.mxu0 0.0
        %860 = vmatprep.subr.mxu0 0.0
        %861 = vmatpush1.xpose.msra.mxu0 0.0
        %862 = vmatprep.subr.mxu0 0.0
        %863 = vmatpush1.xpose.msra.mxu0 0.0
        %864 = vmatprep.subr.mxu0 0.0
        %865 = vmatpush1.xpose.msra.mxu0 0.0
        %866 = vmatprep.subr.mxu0 0.0
        %867 = vmatpush1.xpose.msra.mxu0 0.0
        %868 = vmatprep.subr.mxu0 0.0
        %869 = vmatpush1.xpose.msra.mxu0 0.0
        %870 = vmatprep.subr.mxu0 0.0
        %871 = vmatpush1.xpose.msra.mxu0 0.0
        %872 = vmatprep.subr.mxu0 0.0
        %873 = vmatpush1.xpose.msra.mxu0 0.0
        %874 = vmatprep.subr.mxu0 0.0
        %875 = vmatpush1.xpose.msra.mxu0 0.0
        %876 = vmatprep.subr.mxu0 0.0
        %877 = vmatpush1.xpose.msra.mxu0 0.0
        %878 = vmatprep.subr.mxu0 0.0
        %879 = vmatpush1.xpose.msra.mxu0 0.0
        %880 = vmatprep.subr.mxu0 0.0
        %881 = vmatpush1.xpose.msra.mxu0 0.0
        %882 = vmatprep.subr.mxu0 0.0
        %883 = vmatpush1.xpose.msra.mxu0 0.0
        %884 = vmatprep.subr.mxu0 0.0
        %885 = vmatpush1.xpose.msra.mxu0 0.0
        %886 = vmatprep.subr.mxu0 0.0
        %887 = vmatpush1.xpose.msra.mxu0 0.0
        %888 = vmatprep.subr.mxu0 0.0
        %889 = vmatpush1.xpose.msra.mxu0 0.0
        %890 = vmatprep.mubr.f32.mxu0 0.0
        %891 = vmatmul.mubr.f32.gmra.mrb[0].mxu0 %v816
        %v892 = vpop.f32.mrb[0].mxu0
        %v893 = vadd.f32 0.0, %v892
        %v894 = vpop.f32.mrb[0].mxu0
        %895 = vmatprep.mubr.f32.mxu0 0.0
        %896 = vmatmul.mubr.f32.gmra.mrb[0].mxu0 %v818
        %v897 = vpop.f32.mrb[0].mxu0
        %v898 = vadd.f32 0.0, %v897
        %v899 = vpop.f32.mrb[0].mxu0
        %900 = vmatprep.mubr.f32.mxu0 0.0
        %901 = vmatmul.mubr.f32.gmra.mrb[0].mxu0 %v820
        %v902 = vpop.f32.mrb[0].mxu0
        %v903 = vadd.f32 0.0, %v902
        %v904 = vpop.f32.mrb[0].mxu0
        %905 = vdwg.mxu0
        %v906 = vsel %vm683, %v893, -inf
        %907 = vmax.xlane.f32.xlu0 %v906
        %v908 = vpop.xlane.xlu0 %907
        %v909 = vsel %vm683, %v898, -inf
        %910 = vmax.xlane.f32.xlu0 %v909
        %v911 = vpop.xlane.xlu0 %910
        %v912 = vsel %vm683, %v903, -inf
        %913 = vmax.xlane.f32.xlu0 %v912
        %v914 = vpop.xlane.xlu0 %913
        %v915 = vsub.f32 %v893, %v908
        %v916 = vsub.f32 %v898, %v911
        %v917 = vsub.f32 %v903, %v914
        %v918 = vmul.f32 %v915, 1.442695
        %v919 = vpow.pop %v918
        %v920 = vmul.f32 %v916, 1.442695
        %v921 = vpow.pop %v920
        %v922 = vmul.f32 %v917, 1.442695
        %v923 = vpow.pop %v922
        %v924 = vsel %vm683, %v919, 0.0
        %925 = vadd.xlane.f32.xlu0 %v924
        %v926 = vpop.xlane.xlu0 %925
        %v927 = vsel %vm683, %v921, 0.0
        %928 = vadd.xlane.f32.xlu0 %v927
        %v929 = vpop.xlane.xlu0 %928
        %v930 = vsel %vm683, %v923, 0.0
        %931 = vadd.xlane.f32.xlu0 %v930
        %v932 = vpop.xlane.xlu0 %931
        %935 = vrot.lane.b32.xlu0 %v585, 120
        %v936 = vpop.permute.xlu0 %935
        %937 = vrot.lane.b32.xlu0 %v586, 120
        %v938 = vpop.permute.xlu0 %937
        %v942 = vsel %vm683, %v919, 0
        %v945 = vsel %vm683, %v921, 0
        %v948 = vsel %vm683, %v923, 0
        %950 = vmatprep.subr.mxu0 0.0
        %951 = vmatpush1.msra.mxu0 %v936
        %952 = vmatprep.subr.mxu0 0.0
        %953 = vmatpush1.msra.mxu0 %v938
        %954 = vmatprep.subr.mxu0 0.0
        %955 = vmatpush1.msra.mxu0 0.0
        %956 = vmatprep.subr.mxu0 0.0
        %957 = vmatpush1.msra.mxu0 0.0
        %958 = vmatprep.subr.mxu0 0.0
        %959 = vmatpush1.msra.mxu0 0.0
        %960 = vmatprep.subr.mxu0 0.0
        %961 = vmatpush1.msra.mxu0 0.0
        %962 = vmatprep.subr.mxu0 0.0
        %963 = vmatpush1.msra.mxu0 0.0
        %964 = vmatprep.subr.mxu0 0.0
        %965 = vmatpush1.msra.mxu0 0.0
        %966 = vmatprep.subr.mxu0 0.0
        %967 = vmatpush1.msra.mxu0 0.0
        %968 = vmatprep.subr.mxu0 0.0
        %969 = vmatpush1.msra.mxu0 0.0
        %970 = vmatprep.subr.mxu0 0.0
        %971 = vmatpush1.msra.mxu0 0.0
        %972 = vmatprep.subr.mxu0 0.0
        %973 = vmatpush1.msra.mxu0 0.0
        %974 = vmatprep.subr.mxu0 0.0
        %975 = vmatpush1.msra.mxu0 0.0
        %976 = vmatprep.subr.mxu0 0.0
        %977 = vmatpush1.msra.mxu0 0.0
        %978 = vmatprep.subr.mxu0 0.0
        %979 = vmatpush1.msra.mxu0 0.0
        %980 = vmatprep.subr.mxu0 0.0
        %981 = vmatpush1.msra.mxu0 0.0
        %982 = vmatprep.subr.mxu0 0.0
        %983 = vmatpush1.msra.mxu0 0.0
        %984 = vmatprep.subr.mxu0 0.0
        %985 = vmatpush1.msra.mxu0 0.0
        %986 = vmatprep.subr.mxu0 0.0
        %987 = vmatpush1.msra.mxu0 0.0
        %988 = vmatprep.subr.mxu0 0.0
        %989 = vmatpush1.msra.mxu0 0.0
        %990 = vmatprep.subr.mxu0 0.0
        %991 = vmatpush1.msra.mxu0 0.0
        %992 = vmatprep.subr.mxu0 0.0
        %993 = vmatpush1.msra.mxu0 0.0
        %994 = vmatprep.subr.mxu0 0.0
        %995 = vmatpush1.msra.mxu0 0.0
        %996 = vmatprep.subr.mxu0 0.0
        %997 = vmatpush1.msra.mxu0 0.0
        %998 = vmatprep.subr.mxu0 0.0
        %999 = vmatpush1.msra.mxu0 0.0
        %1000 = vmatprep.subr.mxu0 0.0
        %1001 = vmatpush1.msra.mxu0 0.0
        %1002 = vmatprep.subr.mxu0 0.0
        %1003 = vmatpush1.msra.mxu0 0.0
        %1004 = vmatprep.subr.mxu0 0.0
        %1005 = vmatpush1.msra.mxu0 0.0
        %1006 = vmatprep.subr.mxu0 0.0
        %1007 = vmatpush1.msra.mxu0 0.0
        %1008 = vmatprep.subr.mxu0 0.0
        %1009 = vmatpush1.msra.mxu0 0.0
        %1010 = vmatprep.subr.mxu0 0.0
        %1011 = vmatpush1.msra.mxu0 0.0
        %1012 = vmatprep.subr.mxu0 0.0
        %1013 = vmatpush1.msra.mxu0 0.0
        %1014 = vmatprep.mubr.f32.mxu0 0.0
        %1015 = vmatmul.mubr.f32.gmra.mrb[0].mxu0 %v942
        %v1016 = vpop.f32.mrb[0].mxu0
        %v1017 = vadd.f32 0.0, %v1016
        %v1018 = vpop.f32.mrb[0].mxu0
        %1019 = vmatprep.mubr.f32.mxu0 0.0
        %1020 = vmatmul.mubr.f32.gmra.mrb[0].mxu0 %v945
        %v1021 = vpop.f32.mrb[0].mxu0
        %v1022 = vadd.f32 0.0, %v1021
        %v1023 = vpop.f32.mrb[0].mxu0
        %1024 = vmatprep.mubr.f32.mxu0 0.0
        %1025 = vmatmul.mubr.f32.gmra.mrb[0].mxu0 %v948
        %v1026 = vpop.f32.mrb[0].mxu0
        %v1027 = vadd.f32 0.0, %v1026
        %v1028 = vpop.f32.mrb[0].mxu0
        %1029 = vdwg.mxu0
        %v1030 = vrcp.pop %v926
        %v1031 = vmul.f32 %v1017, %v1030
        %v1032 = vrcp.pop %v929
        %v1033 = vmul.f32 %v1022, %v1032
        %v1034 = vrcp.pop %v932
        %v1035 = vmul.f32 %v1027, %v1034
        %1036 = vrot.lane.b32.xlu0 %v580, 112
        %v1037 = vpop.permute.xlu0 %1036
        %1038 = vrot.lane.b32.xlu0 %v581, 112
        %v1039 = vpop.permute.xlu0 %1038
        %1040 = vrot.lane.b32.xlu0 %v582, 112
        %v1041 = vpop.permute.xlu0 %1040
        %1042 = vrot.lane.b32.xlu0 %v583, 112
        %v1043 = vpop.permute.xlu0 %1042
        %1044 = vrot.lane.b32.xlu0 %v584, 112
        %v1045 = vpop.permute.xlu0 %1044
        %v1046 = vsel %vm587, %v1037, 0
        %v1048 = vsel %vm587, %v1039, 0
        %v1050 = vsel %vm587, %v1041, 0
        %v1052 = vsel %vm587, %v1043, 0
        %v1054 = vsel %vm587, %v1045, 0
        %1056 = vmatprep.subr.mxu0 0.0
        %1057 = vmatpush1.xpose.msra.mxu0 %v1052
        %1058 = vmatprep.subr.mxu0 0.0
        %1059 = vmatpush1.xpose.msra.mxu0 %v1054
        %1060 = vmatprep.subr.mxu0 0.0
        %1061 = vmatpush1.xpose.msra.mxu0 0.0
        %1062 = vmatprep.subr.mxu0 0.0
        %1063 = vmatpush1.xpose.msra.mxu0 0.0
        %1064 = vmatprep.subr.mxu0 0.0
        %1065 = vmatpush1.xpose.msra.mxu0 0.0
        %1066 = vmatprep.subr.mxu0 0.0
        %1067 = vmatpush1.xpose.msra.mxu0 0.0
        %1068 = vmatprep.subr.mxu0 0.0
        %1069 = vmatpush1.xpose.msra.mxu0 0.0
        %1070 = vmatprep.subr.mxu0 0.0
        %1071 = vmatpush1.xpose.msra.mxu0 0.0
        %1072 = vmatprep.subr.mxu0 0.0
        %1073 = vmatpush1.xpose.msra.mxu0 0.0
        %1074 = vmatprep.subr.mxu0 0.0
        %1075 = vmatpush1.xpose.msra.mxu0 0.0
        %1076 = vmatprep.subr.mxu0 0.0
        %1077 = vmatpush1.xpose.msra.mxu0 0.0
        %1078 = vmatprep.subr.mxu0 0.0
        %1079 = vmatpush1.xpose.msra.mxu0 0.0
        %1080 = vmatprep.subr.mxu0 0.0
        %1081 = vmatpush1.xpose.msra.mxu0 0.0
        %1082 = vmatprep.subr.mxu0 0.0
        %1083 = vmatpush1.xpose.msra.mxu0 0.0
        %1084 = vmatprep.subr.mxu0 0.0
        %1085 = vmatpush1.xpose.msra.mxu0 0.0
        %1086 = vmatprep.subr.mxu0 0.0
        %1087 = vmatpush1.xpose.msra.mxu0 0.0
        %1088 = vmatprep.subr.mxu0 0.0
        %1089 = vmatpush1.xpose.msra.mxu0 0.0
        %1090 = vmatprep.subr.mxu0 0.0
        %1091 = vmatpush1.xpose.msra.mxu0 0.0
        %1092 = vmatprep.subr.mxu0 0.0
        %1093 = vmatpush1.xpose.msra.mxu0 0.0
        %1094 = vmatprep.subr.mxu0 0.0
        %1095 = vmatpush1.xpose.msra.mxu0 0.0
        %1096 = vmatprep.subr.mxu0 0.0
        %1097 = vmatpush1.xpose.msra.mxu0 0.0
        %1098 = vmatprep.subr.mxu0 0.0
        %1099 = vmatpush1.xpose.msra.mxu0 0.0
        %1100 = vmatprep.subr.mxu0 0.0
        %1101 = vmatpush1.xpose.msra.mxu0 0.0
        %1102 = vmatprep.subr.mxu0 0.0
        %1103 = vmatpush1.xpose.msra.mxu0 0.0
        %1104 = vmatprep.subr.mxu0 0.0
        %1105 = vmatpush1.xpose.msra.mxu0 0.0
        %1106 = vmatprep.subr.mxu0 0.0
        %1107 = vmatpush1.xpose.msra.mxu0 0.0
        %1108 = vmatprep.subr.mxu0 0.0
        %1109 = vmatpush1.xpose.msra.mxu0 0.0
        %1110 = vmatprep.subr.mxu0 0.0
        %1111 = vmatpush1.xpose.msra.mxu0 0.0
        %1112 = vmatprep.subr.mxu0 0.0
        %1113 = vmatpush1.xpose.msra.mxu0 0.0
        %1114 = vmatprep.subr.mxu0 0.0
        %1115 = vmatpush1.xpose.msra.mxu0 0.0
        %1116 = vmatprep.subr.mxu0 0.0
        %1117 = vmatpush1.xpose.msra.mxu0 0.0
        %1118 = vmatprep.subr.mxu0 0.0
        %1119 = vmatpush1.xpose.msra.mxu0 0.0
        %1120 = vmatprep.mubr.f32.mxu0 0.0
        %1121 = vmatmul.mubr.f32.gmra.mrb[0].mxu0 %v1046
        %v1122 = vpop.f32.mrb[0].mxu0
        %v1123 = vadd.f32 0.0, %v1122
        %v1124 = vpop.f32.mrb[0].mxu0
        %1125 = vmatprep.mubr.f32.mxu0 0.0
        %1126 = vmatmul.mubr.f32.gmra.mrb[0].mxu0 %v1048
        %v1127 = vpop.f32.mrb[0].mxu0
        %v1128 = vadd.f32 0.0, %v1127
        %v1129 = vpop.f32.mrb[0].mxu0
        %1130 = vmatprep.mubr.f32.mxu0 0.0
        %1131 = vmatmul.mubr.f32.gmra.mrb[0].mxu0 %v1050
        %v1132 = vpop.f32.mrb[0].mxu0
        %v1133 = vadd.f32 0.0, %v1132
        %v1134 = vpop.f32.mrb[0].mxu0
        %1135 = vdwg.mxu0
        %v1136 = vsel %vm683, %v1123, -inf
        %1137 = vmax.xlane.f32.xlu0 %v1136
        %v1138 = vpop.xlane.xlu0 %1137
        %v1139 = vsel %vm683, %v1128, -inf
        %1140 = vmax.xlane.f32.xlu0 %v1139
        %v1141 = vpop.xlane.xlu0 %1140
        %v1142 = vsel %vm683, %v1133, -inf
        %1143 = vmax.xlane.f32.xlu0 %v1142
        %v1144 = vpop.xlane.xlu0 %1143
        %v1145 = vsub.f32 %v1123, %v1138
        %v1146 = vsub.f32 %v1128, %v1141
        %v1147 = vsub.f32 %v1133, %v1144
        %v1148 = vmul.f32 %v1145, 1.442695
        %v1149 = vpow.pop %v1148
        %v1150 = vmul.f32 %v1146, 1.442695
        %v1151 = vpow.pop %v1150
        %v1152 = vmul.f32 %v1147, 1.442695
        %v1153 = vpow.pop %v1152
        %v1154 = vsel %vm683, %v1149, 0.0
        %1155 = vadd.xlane.f32.xlu0 %v1154
        %v1156 = vpop.xlane.xlu0 %1155
        %v1157 = vsel %vm683, %v1151, 0.0
        %1158 = vadd.xlane.f32.xlu0 %v1157
        %v1159 = vpop.xlane.xlu0 %1158
        %v1160 = vsel %vm683, %v1153, 0.0
        %1161 = vadd.xlane.f32.xlu0 %v1160
        %v1162 = vpop.xlane.xlu0 %1161
        %1163 = vrot.lane.b32.xlu0 %v585, 112
        %v1164 = vpop.permute.xlu0 %1163
        %1165 = vrot.lane.b32.xlu0 %v586, 112
        %v1166 = vpop.permute.xlu0 %1165
        %v1170 = vsel %vm683, %v1149, 0
        %v1173 = vsel %vm683, %v1151, 0
        %v1176 = vsel %vm683, %v1153, 0
        %1178 = vmatprep.subr.mxu0 0.0
        %1179 = vmatpush1.msra.mxu0 %v1164
        %1180 = vmatprep.subr.mxu0 0.0
        %1181 = vmatpush1.msra.mxu0 %v1166
        %1182 = vmatprep.subr.mxu0 0.0
        %1183 = vmatpush1.msra.mxu0 0.0
        %1184 = vmatprep.subr.mxu0 0.0
        %1185 = vmatpush1.msra.mxu0 0.0
        %1186 = vmatprep.subr.mxu0 0.0
        %1187 = vmatpush1.msra.mxu0 0.0
        %1188 = vmatprep.subr.mxu0 0.0
        %1189 = vmatpush1.msra.mxu0 0.0
        %1190 = vmatprep.subr.mxu0 0.0
        %1191 = vmatpush1.msra.mxu0 0.0
        %1192 = vmatprep.subr.mxu0 0.0
        %1193 = vmatpush1.msra.mxu0 0.0
        %1194 = vmatprep.subr.mxu0 0.0
        %1195 = vmatpush1.msra.mxu0 0.0
        %1196 = vmatprep.subr.mxu0 0.0
        %1197 = vmatpush1.msra.mxu0 0.0
        %1198 = vmatprep.subr.mxu0 0.0
        %1199 = vmatpush1.msra.mxu0 0.0
        %1200 = vmatprep.subr.mxu0 0.0
        %1201 = vmatpush1.msra.mxu0 0.0
        %1202 = vmatprep.subr.mxu0 0.0
        %1203 = vmatpush1.msra.mxu0 0.0
        %1204 = vmatprep.subr.mxu0 0.0
        %1205 = vmatpush1.msra.mxu0 0.0
        %1206 = vmatprep.subr.mxu0 0.0
        %1207 = vmatpush1.msra.mxu0 0.0
        %1208 = vmatprep.subr.mxu0 0.0
        %1209 = vmatpush1.msra.mxu0 0.0
        %1210 = vmatprep.subr.mxu0 0.0
        %1211 = vmatpush1.msra.mxu0 0.0
        %1212 = vmatprep.subr.mxu0 0.0
        %1213 = vmatpush1.msra.mxu0 0.0
        %1214 = vmatprep.subr.mxu0 0.0
        %1215 = vmatpush1.msra.mxu0 0.0
        %1216 = vmatprep.subr.mxu0 0.0
        %1217 = vmatpush1.msra.mxu0 0.0
        %1218 = vmatprep.subr.mxu0 0.0
        %1219 = vmatpush1.msra.mxu0 0.0
        %1220 = vmatprep.subr.mxu0 0.0
        %1221 = vmatpush1.msra.mxu0 0.0
        %1222 = vmatprep.subr.mxu0 0.0
        %1223 = vmatpush1.msra.mxu0 0.0
        %1224 = vmatprep.subr.mxu0 0.0
        %1225 = vmatpush1.msra.mxu0 0.0
        %1226 = vmatprep.subr.mxu0 0.0
        %1227 = vmatpush1.msra.mxu0 0.0
        %1228 = vmatprep.subr.mxu0 0.0
        %1229 = vmatpush1.msra.mxu0 0.0
        %1230 = vmatprep.subr.mxu0 0.0
        %1231 = vmatpush1.msra.mxu0 0.0
        %1232 = vmatprep.subr.mxu0 0.0
        %1233 = vmatpush1.msra.mxu0 0.0
        %1234 = vmatprep.subr.mxu0 0.0
        %1235 = vmatpush1.msra.mxu0 0.0
        %1236 = vmatprep.subr.mxu0 0.0
        %1237 = vmatpush1.msra.mxu0 0.0
        %1238 = vmatprep.subr.mxu0 0.0
        %1239 = vmatpush1.msra.mxu0 0.0
        %1240 = vmatprep.subr.mxu0 0.0
        %1241 = vmatpush1.msra.mxu0 0.0
        %1242 = vmatprep.mubr.f32.mxu0 0.0
        %1243 = vmatmul.mubr.f32.gmra.mrb[0].mxu0 %v1170
        %v1244 = vpop.f32.mrb[0].mxu0
        %v1245 = vadd.f32 0.0, %v1244
        %v1246 = vpop.f32.mrb[0].mxu0
        %1247 = vmatprep.mubr.f32.mxu0 0.0
        %1248 = vmatmul.mubr.f32.gmra.mrb[0].mxu0 %v1173
        %v1249 = vpop.f32.mrb[0].mxu0
        %v1250 = vadd.f32 0.0, %v1249
        %v1251 = vpop.f32.mrb[0].mxu0
        %1252 = vmatprep.mubr.f32.mxu0 0.0
        %1253 = vmatmul.mubr.f32.gmra.mrb[0].mxu0 %v1176
        %v1254 = vpop.f32.mrb[0].mxu0
        %v1255 = vadd.f32 0.0, %v1254
        %v1256 = vpop.f32.mrb[0].mxu0
        %1257 = vdwg.mxu0
        %v1258 = vrcp.pop %v1156
        %v1259 = vmul.f32 %v1245, %v1258
        %v1260 = vrcp.pop %v1159
        %v1261 = vmul.f32 %v1250, %v1260
        %v1262 = vrcp.pop %v1162
        %v1263 = vmul.f32 %v1255, %v1262
        %1264 = vrot.lane.b32.xlu0 %v580, 104
        %v1265 = vpop.permute.xlu0 %1264
        %1266 = vrot.lane.b32.xlu0 %v581, 104
        %v1267 = vpop.permute.xlu0 %1266
        %1268 = vrot.lane.b32.xlu0 %v582, 104
        %v1269 = vpop.permute.xlu0 %1268
        %1270 = vrot.lane.b32.xlu0 %v583, 104
        %v1271 = vpop.permute.xlu0 %1270
        %1272 = vrot.lane.b32.xlu0 %v584, 104
        %v1273 = vpop.permute.xlu0 %1272
        %v1274 = vsel %vm587, %v1265, 0
        %v1276 = vsel %vm587, %v1267, 0
        %v1278 = vsel %vm587, %v1269, 0
        %v1280 = vsel %vm587, %v1271, 0
        %v1282 = vsel %vm587, %v1273, 0
        %1284 = vmatprep.subr.mxu0 0.0
        %1285 = vmatpush1.xpose.msra.mxu0 %v1280
        %1286 = vmatprep.subr.mxu0 0.0
        %1287 = vmatpush1.xpose.msra.mxu0 %v1282
        %1288 = vmatprep.subr.mxu0 0.0
        %1289 = vmatpush1.xpose.msra.mxu0 0.0
        %1290 = vmatprep.subr.mxu0 0.0
        %1291 = vmatpush1.xpose.msra.mxu0 0.0
        %1292 = vmatprep.subr.mxu0 0.0
        %1293 = vmatpush1.xpose.msra.mxu0 0.0
        %1294 = vmatprep.subr.mxu0 0.0
        %1295 = vmatpush1.xpose.msra.mxu0 0.0
        %1296 = vmatprep.subr.mxu0 0.0
        %1297 = vmatpush1.xpose.msra.mxu0 0.0
        %1298 = vmatprep.subr.mxu0 0.0
        %1299 = vmatpush1.xpose.msra.mxu0 0.0
        %1300 = vmatprep.subr.mxu0 0.0
        %1301 = vmatpush1.xpose.msra.mxu0 0.0
        %1302 = vmatprep.subr.mxu0 0.0
        %1303 = vmatpush1.xpose.msra.mxu0 0.0
        %1304 = vmatprep.subr.mxu0 0.0
        %1305 = vmatpush1.xpose.msra.mxu0 0.0
        %1306 = vmatprep.subr.mxu0 0.0
        %1307 = vmatpush1.xpose.msra.mxu0 0.0
        %1308 = vmatprep.subr.mxu0 0.0
        %1309 = vmatpush1.xpose.msra.mxu0 0.0
        %1310 = vmatprep.subr.mxu0 0.0
        %1311 = vmatpush1.xpose.msra.mxu0 0.0
        %1312 = vmatprep.subr.mxu0 0.0
        %1313 = vmatpush1.xpose.msra.mxu0 0.0
        %1314 = vmatprep.subr.mxu0 0.0
        %1315 = vmatpush1.xpose.msra.mxu0 0.0
        %1316 = vmatprep.subr.mxu0 0.0
        %1317 = vmatpush1.xpose.msra.mxu0 0.0
        %1318 = vmatprep.subr.mxu0 0.0
        %1319 = vmatpush1.xpose.msra.mxu0 0.0
        %1320 = vmatprep.subr.mxu0 0.0
        %1321 = vmatpush1.xpose.msra.mxu0 0.0
        %1322 = vmatprep.subr.mxu0 0.0
        %1323 = vmatpush1.xpose.msra.mxu0 0.0
        %1324 = vmatprep.subr.mxu0 0.0
        %1325 = vmatpush1.xpose.msra.mxu0 0.0
        %1326 = vmatprep.subr.mxu0 0.0
        %1327 = vmatpush1.xpose.msra.mxu0 0.0
        %1328 = vmatprep.subr.mxu0 0.0
        %1329 = vmatpush1.xpose.msra.mxu0 0.0
        %1330 = vmatprep.subr.mxu0 0.0
        %1331 = vmatpush1.xpose.msra.mxu0 0.0
        %1332 = vmatprep.subr.mxu0 0.0
        %1333 = vmatpush1.xpose.msra.mxu0 0.0
        %1334 = vmatprep.subr.mxu0 0.0
        %1335 = vmatpush1.xpose.msra.mxu0 0.0
        %1336 = vmatprep.subr.mxu0 0.0
        %1337 = vmatpush1.xpose.msra.mxu0 0.0
        %1338 = vmatprep.subr.mxu0 0.0
        %1339 = vmatpush1.xpose.msra.mxu0 0.0
        %1340 = vmatprep.subr.mxu0 0.0
        %1341 = vmatpush1.xpose.msra.mxu0 0.0
        %1342 = vmatprep.subr.mxu0 0.0
        %1343 = vmatpush1.xpose.msra.mxu0 0.0
        %1344 = vmatprep.subr.mxu0 0.0
        %1345 = vmatpush1.xpose.msra.mxu0 0.0
        %1346 = vmatprep.subr.mxu0 0.0
        %1347 = vmatpush1.xpose.msra.mxu0 0.0
        %1348 = vmatprep.mubr.f32.mxu0 0.0
        %1349 = vmatmul.mubr.f32.gmra.mrb[0].mxu0 %v1274
        %v1350 = vpop.f32.mrb[0].mxu0
        %v1351 = vadd.f32 0.0, %v1350
        %v1352 = vpop.f32.mrb[0].mxu0
        %1353 = vmatprep.mubr.f32.mxu0 0.0
        %1354 = vmatmul.mubr.f32.gmra.mrb[0].mxu0 %v1276
        %v1355 = vpop.f32.mrb[0].mxu0
        %v1356 = vadd.f32 0.0, %v1355
        %v1357 = vpop.f32.mrb[0].mxu0
        %1358 = vmatprep.mubr.f32.mxu0 0.0
        %1359 = vmatmul.mubr.f32.gmra.mrb[0].mxu0 %v1278
        %v1360 = vpop.f32.mrb[0].mxu0
        %v1361 = vadd.f32 0.0, %v1360
        %v1362 = vpop.f32.mrb[0].mxu0
        %1363 = vdwg.mxu0
        %v1364 = vsel %vm683, %v1351, -inf
        %1365 = vmax.xlane.f32.xlu0 %v1364
        %v1366 = vpop.xlane.xlu0 %1365
        %v1367 = vsel %vm683, %v1356, -inf
        %1368 = vmax.xlane.f32.xlu0 %v1367
        %v1369 = vpop.xlane.xlu0 %1368
        %v1370 = vsel %vm683, %v1361, -inf
        %1371 = vmax.xlane.f32.xlu0 %v1370
        %v1372 = vpop.xlane.xlu0 %1371
        %v1373 = vsub.f32 %v1351, %v1366
        %v1374 = vsub.f32 %v1356, %v1369
        %v1375 = vsub.f32 %v1361, %v1372
        %v1376 = vmul.f32 %v1373, 1.442695
        %v1377 = vpow.pop %v1376
        %v1378 = vmul.f32 %v1374, 1.442695
        %v1379 = vpow.pop %v1378
        %v1380 = vmul.f32 %v1375, 1.442695
        %v1381 = vpow.pop %v1380
        %v1382 = vsel %vm683, %v1377, 0.0
        %1383 = vadd.xlane.f32.xlu0 %v1382
        %v1384 = vpop.xlane.xlu0 %1383
        %v1385 = vsel %vm683, %v1379, 0.0
        %1386 = vadd.xlane.f32.xlu0 %v1385
        %v1387 = vpop.xlane.xlu0 %1386
        %v1388 = vsel %vm683, %v1381, 0.0
        %1389 = vadd.xlane.f32.xlu0 %v1388
        %v1390 = vpop.xlane.xlu0 %1389
        %1391 = vrot.lane.b32.xlu0 %v585, 104
        %v1392 = vpop.permute.xlu0 %1391
        %1393 = vrot.lane.b32.xlu0 %v586, 104
        %v1394 = vpop.permute.xlu0 %1393
        %v1398 = vsel %vm683, %v1377, 0
        %v1401 = vsel %vm683, %v1379, 0
        %v1404 = vsel %vm683, %v1381, 0
        %1406 = vmatprep.subr.mxu0 0.0
        %1407 = vmatpush1.msra.mxu0 %v1392
        %1408 = vmatprep.subr.mxu0 0.0
        %1409 = vmatpush1.msra.mxu0 %v1394
        %1410 = vmatprep.subr.mxu0 0.0
        %1411 = vmatpush1.msra.mxu0 0.0
        %1412 = vmatprep.subr.mxu0 0.0
        %1413 = vmatpush1.msra.mxu0 0.0
        %1414 = vmatprep.subr.mxu0 0.0
        %1415 = vmatpush1.msra.mxu0 0.0
        %1416 = vmatprep.subr.mxu0 0.0
        %1417 = vmatpush1.msra.mxu0 0.0
        %1418 = vmatprep.subr.mxu0 0.0
        %1419 = vmatpush1.msra.mxu0 0.0
        %1420 = vmatprep.subr.mxu0 0.0
        %1421 = vmatpush1.msra.mxu0 0.0
        %1422 = vmatprep.subr.mxu0 0.0
        %1423 = vmatpush1.msra.mxu0 0.0
        %1424 = vmatprep.subr.mxu0 0.0
        %1425 = vmatpush1.msra.mxu0 0.0
        %1426 = vmatprep.subr.mxu0 0.0
        %1427 = vmatpush1.msra.mxu0 0.0
        %1428 = vmatprep.subr.mxu0 0.0
        %1429 = vmatpush1.msra.mxu0 0.0
        %1430 = vmatprep.subr.mxu0 0.0
        %1431 = vmatpush1.msra.mxu0 0.0
        %1432 = vmatprep.subr.mxu0 0.0
        %1433 = vmatpush1.msra.mxu0 0.0
        %1434 = vmatprep.subr.mxu0 0.0
        %1435 = vmatpush1.msra.mxu0 0.0
        %1436 = vmatprep.subr.mxu0 0.0
        %1437 = vmatpush1.msra.mxu0 0.0
        %1438 = vmatprep.subr.mxu0 0.0
        %1439 = vmatpush1.msra.mxu0 0.0
        %1440 = vmatprep.subr.mxu0 0.0
        %1441 = vmatpush1.msra.mxu0 0.0
        %1442 = vmatprep.subr.mxu0 0.0
        %1443 = vmatpush1.msra.mxu0 0.0
        %1444 = vmatprep.subr.mxu0 0.0
        %1445 = vmatpush1.msra.mxu0 0.0
        %1446 = vmatprep.subr.mxu0 0.0
        %1447 = vmatpush1.msra.mxu0 0.0
        %1448 = vmatprep.subr.mxu0 0.0
        %1449 = vmatpush1.msra.mxu0 0.0
        %1450 = vmatprep.subr.mxu0 0.0
        %1451 = vmatpush1.msra.mxu0 0.0
        %1452 = vmatprep.subr.mxu0 0.0
        %1453 = vmatpush1.msra.mxu0 0.0
        %1454 = vmatprep.subr.mxu0 0.0
        %1455 = vmatpush1.msra.mxu0 0.0
        %1456 = vmatprep.subr.mxu0 0.0
        %1457 = vmatpush1.msra.mxu0 0.0
        %1458 = vmatprep.subr.mxu0 0.0
        %1459 = vmatpush1.msra.mxu0 0.0
        %1460 = vmatprep.subr.mxu0 0.0
        %1461 = vmatpush1.msra.mxu0 0.0
        %1462 = vmatprep.subr.mxu0 0.0
        %1463 = vmatpush1.msra.mxu0 0.0
        %1464 = vmatprep.subr.mxu0 0.0
        %1465 = vmatpush1.msra.mxu0 0.0
        %1466 = vmatprep.subr.mxu0 0.0
        %1467 = vmatpush1.msra.mxu0 0.0
        %1468 = vmatprep.subr.mxu0 0.0
        %1469 = vmatpush1.msra.mxu0 0.0
        %1470 = vmatprep.mubr.f32.mxu0 0.0
        %1471 = vmatmul.mubr.f32.gmra.mrb[0].mxu0 %v1398
        %v1472 = vpop.f32.mrb[0].mxu0
        %v1473 = vadd.f32 0.0, %v1472
        %v1474 = vpop.f32.mrb[0].mxu0
        %1475 = vmatprep.mubr.f32.mxu0 0.0
        %1476 = vmatmul.mubr.f32.gmra.mrb[0].mxu0 %v1401
        %v1477 = vpop.f32.mrb[0].mxu0
        %v1478 = vadd.f32 0.0, %v1477
        %v1479 = vpop.f32.mrb[0].mxu0
        %1480 = vmatprep.mubr.f32.mxu0 0.0
        %1481 = vmatmul.mubr.f32.gmra.mrb[0].mxu0 %v1404
        %v1482 = vpop.f32.mrb[0].mxu0
        %v1483 = vadd.f32 0.0, %v1482
        %v1484 = vpop.f32.mrb[0].mxu0
        %1485 = vdwg.mxu0
        %v1486 = vrcp.pop %v1384
        %v1487 = vmul.f32 %v1473, %v1486
        %v1488 = vrcp.pop %v1387
        %v1489 = vmul.f32 %v1478, %v1488
        %v1490 = vrcp.pop %v1390
        %v1491 = vmul.f32 %v1483, %v1490
        %1495 = vrot.lane.b32.xlu0 %v1031, 8
        %v1496 = vpop.permute.xlu0 %1495
        %1497 = vrot.lane.b32.xlu0 %v1033, 8
        %v1498 = vpop.permute.xlu0 %1497
        %1499 = vrot.lane.b32.xlu0 %v1035, 8
        %v1500 = vpop.permute.xlu0 %1499
        %1507 = vrot.lane.b32.xlu0 %v1259, 16
        %v1508 = vpop.permute.xlu0 %1507
        %1509 = vrot.lane.b32.xlu0 %v1261, 16
        %v1510 = vpop.permute.xlu0 %1509
        %1511 = vrot.lane.b32.xlu0 %v1263, 16
        %v1512 = vpop.permute.xlu0 %1511
        %1519 = vrot.lane.b32.xlu0 %v1487, 24
        %v1520 = vpop.permute.xlu0 %1519
        %1521 = vrot.lane.b32.xlu0 %v1489, 24
        %v1522 = vpop.permute.xlu0 %1521
        %1523 = vrot.lane.b32.xlu0 %v1491, 24
        %v1524 = vpop.permute.xlu0 %1523
        %v1528 = vsel %vm587, %v801, %v1496
        %v1529 = vsel %vm587, %v803, %v1498
        %v1530 = vsel %vm587, %v805, %v1500
        %v1531 = vsel %vm683, %v1528, %v1508
        %v1532 = vsel %vm683, %v1529, %v1510
        %v1533 = vsel %vm683, %v1530, %v1512
        %vm1534 = vcmask 195584
        %v1535 = vsel %vm1534, %v1531, %v1520
        %v1536 = vsel %vm1534, %v1532, %v1522
        %v1537 = vsel %vm1534, %v1533, %v1524
        %v1538 = vld [vmem:[%s4] sm:$0xff]
        %v1539 = vld [vmem:[%s4 + $0x8] sm:$0xff]
        %v1540 = vld [vmem:[%s4 + $0x10] sm:$0xff]
        %v1541 = vld [vmem:[%s4 + $0x18] sm:$0xff]
        %vm1542 = vcmask 261120
        %v1544 = vsel %vm1542, %v1535, 0
        %v1547 = vsel %vm1542, %v1536, 0
        %v1550 = vsel %vm1542, %v1537, 0
        %1552 = vmatprep.subr.mxu0 0.0
        %1553 = vmatpush1.msra.mxu0 %v1538
        %1554 = vmatprep.subr.mxu0 0.0
        %1555 = vmatpush1.msra.mxu0 %v1539
        %1556 = vmatprep.subr.mxu0 0.0
        %1557 = vmatpush1.msra.mxu0 %v1540
        %1558 = vmatprep.subr.mxu0 0.0
        %1559 = vmatpush1.msra.mxu0 %v1541
        %1560 = vmatprep.subr.mxu0 0.0
        %1561 = vmatpush1.msra.mxu0 0.0
        %1562 = vmatprep.subr.mxu0 0.0
        %1563 = vmatpush1.msra.mxu0 0.0
        %1564 = vmatprep.subr.mxu0 0.0
        %1565 = vmatpush1.msra.mxu0 0.0
        %1566 = vmatprep.subr.mxu0 0.0
        %1567 = vmatpush1.msra.mxu0 0.0
        %1568 = vmatprep.subr.mxu0 0.0
        %1569 = vmatpush1.msra.mxu0 0.0
        %1570 = vmatprep.subr.mxu0 0.0
        %1571 = vmatpush1.msra.mxu0 0.0
        %1572 = vmatprep.subr.mxu0 0.0
        %1573 = vmatpush1.msra.mxu0 0.0
        %1574 = vmatprep.subr.mxu0 0.0
        %1575 = vmatpush1.msra.mxu0 0.0
        %1576 = vmatprep.subr.mxu0 0.0
        %1577 = vmatpush1.msra.mxu0 0.0
        %1578 = vmatprep.subr.mxu0 0.0
        %1579 = vmatpush1.msra.mxu0 0.0
        %1580 = vmatprep.subr.mxu0 0.0
        %1581 = vmatpush1.msra.mxu0 0.0
        %1582 = vmatprep.subr.mxu0 0.0
        %1583 = vmatpush1.msra.mxu0 0.0
        %1584 = vmatprep.subr.mxu0 0.0
        %1585 = vmatpush1.msra.mxu0 0.0
        %1586 = vmatprep.subr.mxu0 0.0
        %1587 = vmatpush1.msra.mxu0 0.0
        %1588 = vmatprep.subr.mxu0 0.0
        %1589 = vmatpush1.msra.mxu0 0.0
        %1590 = vmatprep.subr.mxu0 0.0
        %1591 = vmatpush1.msra.mxu0 0.0
        %1592 = vmatprep.subr.mxu0 0.0
        %1593 = vmatpush1.msra.mxu0 0.0
        %1594 = vmatprep.subr.mxu0 0.0
        %1595 = vmatpush1.msra.mxu0 0.0
        %1596 = vmatprep.subr.mxu0 0.0
        %1597 = vmatpush1.msra.mxu0 0.0
        %1598 = vmatprep.subr.mxu0 0.0
        %1599 = vmatpush1.msra.mxu0 0.0
        %1600 = vmatprep.subr.mxu0 0.0
        %1601 = vmatpush1.msra.mxu0 0.0
        %1602 = vmatprep.subr.mxu0 0.0
        %1603 = vmatpush1.msra.mxu0 0.0
        %1604 = vmatprep.subr.mxu0 0.0
        %1605 = vmatpush1.msra.mxu0 0.0
        %1606 = vmatprep.subr.mxu0 0.0
        %1607 = vmatpush1.msra.mxu0 0.0
        %1608 = vmatprep.subr.mxu0 0.0
        %1609 = vmatpush1.msra.mxu0 0.0
        %1610 = vmatprep.subr.mxu0 0.0
        %1611 = vmatpush1.msra.mxu0 0.0
        %1612 = vmatprep.subr.mxu0 0.0
        %1613 = vmatpush1.msra.mxu0 0.0
        %1614 = vmatprep.subr.mxu0 0.0
        %1615 = vmatpush1.msra.mxu0 0.0
        %1616 = vmatprep.mubr.f32.mxu0 0.0
        %1617 = vmatmul.mubr.f32.gmra.mrb[0].mxu0 %v1544
        %v1618 = vpop.f32.mrb[0].mxu0
        %v1619 = vadd.f32 0.0, %v1618
        %v1620 = vpop.f32.mrb[0].mxu0
        %1621 = vmatprep.mubr.f32.mxu0 0.0
        %1622 = vmatmul.mubr.f32.gmra.mrb[0].mxu0 %v1547
        %v1623 = vpop.f32.mrb[0].mxu0
        %v1624 = vadd.f32 0.0, %v1623
        %v1625 = vpop.f32.mrb[0].mxu0
        %1626 = vmatprep.mubr.f32.mxu0 0.0
        %1627 = vmatmul.mubr.f32.gmra.mrb[0].mxu0 %v1550
        %v1628 = vpop.f32.mrb[0].mxu0
        %v1629 = vadd.f32 0.0, %v1628
        %v1630 = vpop.f32.mrb[0].mxu0
        %1631 = vdwg.mxu0
        %s1632 = scalar_lea.vmem [#allocation2], %s578
        %v1633 = vld [vmem:[%s1632] sm:$0xff]
        %v1634 = vld [vmem:[%s1632 + $0x8] sm:$0xff]
        %v1635 = vld [vmem:[%s1632 + $0x10] sm:$0xff]
        %v1636 = vadd.f32 %v1633, %v1619
        %v1637 = vadd.f32 %v1634, %v1624
        %v1638 = vadd.f32 %v1635, %v1629
        %v1639 = vlaneseq
        %v1640 = vshrl.u32 %v1639, 7
        %v1641 = vadd.s32 %v1640, 8
        %v1642 = vadd.s32 %v1640, 16
        %s1643 = ssub.s32 %s578, 8
        %v1644 = vstv %s1643
        %v1645 = vadd.s32 %v1640, %v1644
        %v1646 = vadd.s32 %v1641, %v1644
        %v1647 = vadd.s32 %v1642, %v1644
        %vm1648 = vcmp.ge.s32.totalorder %v1645, 0
        %vm1649 = vcmp.ge.s32.totalorder %v1646, 0
        %vm1650 = vcmp.ge.s32.totalorder %v1647, 0
        %vm1651 = vcmp.lt.s32.totalorder %v1645, 16
        %vm1652 = vcmp.lt.s32.totalorder %v1646, 16
        %vm1653 = vcmp.lt.s32.totalorder %v1647, 16
        %vm1654 = vmand %vm1648, %vm1651
        %vm1655 = vmand %vm1649, %vm1652
        %vm1656 = vmand %vm1650, %vm1653
        %v1657 = vld [vmem:[%s5] sm:$0x1]
        %v1658 = vld [vmem:[%s6] sm:$0x1]
        %v1659 = vsel %vm1542, %v1636, 0.0
        %1660 = vadd.xlane.f32.xlu0 %v1659
        %v1661 = vpop.xlane.xlu0 %1660
        %v1662 = vsel %vm1542, %v1637, 0.0
        %1663 = vadd.xlane.f32.xlu0 %v1662
        %v1664 = vpop.xlane.xlu0 %1663
        %v1665 = vsel %vm1542, %v1638, 0.0
        %1666 = vadd.xlane.f32.xlu0 %v1665
        %v1667 = vpop.xlane.xlu0 %1666
        %v1668 = vrcp.pop 32.0
        %v1669 = vmul.f32 %v1661, %v1668
        %v1670 = vmul.f32 %v1664, %v1668
        %v1671 = vmul.f32 %v1667, %v1668
        %v1672 = vsub.f32 %v1636, %v1669
        %v1673 = vsub.f32 %v1637, %v1670
        %v1674 = vsub.f32 %v1638, %v1671
        %v1675 = vmul.f32 %v1672, %v1672
        %v1676 = vmul.f32 %v1673, %v1673
        %v1677 = vmul.f32 %v1674, %v1674
        %v1678 = vsel %vm1542, %v1675, 0.0
        %1679 = vadd.xlane.f32.xlu0 %v1678
        %v1680 = vpop.xlane.xlu0 %1679
        %v1681 = vsel %vm1542, %v1676, 0.0
        %1682 = vadd.xlane.f32.xlu0 %v1681
        %v1683 = vpop.xlane.xlu0 %1682
        %v1684 = vsel %vm1542, %v1677, 0.0
        %1685 = vadd.xlane.f32.xlu0 %v1684
        %v1686 = vpop.xlane.xlu0 %1685
        %v1687 = vmul.f32 %v1680, 0.032258064
        %v1688 = vmul.f32 %v1683, 0.032258064
        %v1689 = vmul.f32 %v1686, 0.032258064
        %v1690 = vrsqrt.pop %v1687
        %v1691 = vmul.f32 %v1687, %v1690
        %vm1692 = vcmp.eq.f32.partialorder %v1687, inf
        %v1693 = vsel %vm1692, %v1687, %v1691
        %vm1694 = vcmp.eq.f32.partialorder %v1687, 0.0
        %v1695 = vand.u32 %v1687, 2147483648
        %v1696 = vsel %vm1694, %v1695, %v1693
        %v1697 = vrsqrt.pop %v1688
        %v1698 = vmul.f32 %v1688, %v1697
        %vm1699 = vcmp.eq.f32.partialorder %v1688, inf
        %v1700 = vsel %vm1699, %v1688, %v1698
        %vm1701 = vcmp.eq.f32.partialorder %v1688, 0.0
        %v1702 = vand.u32 %v1688, 2147483648
        %v1703 = vsel %vm1701, %v1702, %v1700
        %v1704 = vrsqrt.pop %v1689
        %v1705 = vmul.f32 %v1689, %v1704
        %vm1706 = vcmp.eq.f32.partialorder %v1689, inf
        %v1707 = vsel %vm1706, %v1689, %v1705
        %vm1708 = vcmp.eq.f32.partialorder %v1689, 0.0
        %v1709 = vand.u32 %v1689, 2147483648
        %v1710 = vsel %vm1708, %v1709, %v1707
        %v1711 = vadd.f32 %v1696, 1e-06
        %v1712 = vadd.f32 %v1703, 1e-06
        %v1713 = vadd.f32 %v1710, 1e-06
        %v1714 = vrcp.pop %v1711
        %v1715 = vmul.f32 %v1672, %v1714
        %v1716 = vrcp.pop %v1712
        %v1717 = vmul.f32 %v1673, %v1716
        %v1718 = vrcp.pop %v1713
        %v1719 = vmul.f32 %v1674, %v1718
        %v1721 = vlaneseq
        %v1722 = vshrl.u32 %v1721, 7
        %v1723 = vsub.s32 0, %v1722
        %v1724 = vrot.slane %v1657, %v1723
        %v1726 = vmul.f32 %v1724, %v1715
        %v1727 = vmul.f32 %v1724, %v1717
        %v1728 = vmul.f32 %v1724, %v1719
        %v1730 = vlaneseq
        %v1731 = vshrl.u32 %v1730, 7
        %v1732 = vsub.s32 0, %v1731
        %v1733 = vrot.slane %v1658, %v1732
        %v1735 = vadd.f32 %v1726, %v1733
        %v1736 = vadd.f32 %v1727, %v1733
        %v1737 = vadd.f32 %v1728, %v1733
        %v1738 = vsel %vm1654, 1, 0
        %v1739 = vsel %vm1655, 1, 0
        %v1740 = vsel %vm1656, 1, 0
        %vm1741 = vcmp.eq.s32.totalorder %v1738, 1
        %vm1742 = vcmp.eq.s32.totalorder %v1739, 1
        %vm1743 = vcmp.eq.s32.totalorder %v1740, 1
        %v1744 = vsel %vm1741, %v1735, 0.0
        %v1745 = vsel %vm1742, %v1736, 0.0
        %v1746 = vsel %vm1743, %v1737, 0.0
        %v1747 = vrot.slane %v1744, 7
        %v1748 = vrot.slane %v1745, 7
        %v1749 = vrot.slane %v1746, 7
        %vm1750 = vcmp.lt.s32.totalorder %v1640, 1
        %v1751 = vsel %vm1750, %v1748, %v1749
        %v1752 = vsel %vm1750, %v1747, %v1748
        %v1753 = vsel %vm1750, %v1749, %v1747
        %v1754 = vrot.slane %v1744, 1
        %v1755 = vrot.slane %v1745, 1
        %v1756 = vrot.slane %v1746, 1
        %vm1757 = vcmp.lt.s32.totalorder %v1640, 7
        %v1758 = vsel %vm1757, %v1755, %v1756
        %v1759 = vsel %vm1757, %v1754, %v1755
        %v1760 = vsel %vm1757, %v1756, %v1754
        %v1761 = vld [vmem:[%s7] sm:$0xff]
        %v1762 = vld [vmem:[%s7 + $0x8] sm:$0xff]
        %v1763 = vld [vmem:[%s7 + $0x10] sm:$0xff]
        %v1764 = vld [vmem:[%s7 + $0x18] sm:$0xff]
        %s1765 = scalar_lea.vmem %s7, 32
        %v1766 = vld [vmem:[%s1765] sm:$0xff]
        %v1767 = vld [vmem:[%s1765 + $0x8] sm:$0xff]
        %v1768 = vld [vmem:[%s1765 + $0x10] sm:$0xff]
        %v1769 = vld [vmem:[%s1765 + $0x18] sm:$0xff]
        %v1771 = vsel %vm1542, %v1744, 0
        %v1774 = vsel %vm1542, %v1745, 0
        %v1777 = vsel %vm1542, %v1746, 0
        %1779 = vmatprep.subr.mxu0 0.0
        %1780 = vmatpush1.msra.mxu0 %v1766
        %1781 = vmatprep.subr.mxu0 0.0
        %1782 = vmatpush1.msra.mxu0 %v1767
        %1783 = vmatprep.subr.mxu0 0.0
        %1784 = vmatpush1.msra.mxu0 %v1768
        %1785 = vmatprep.subr.mxu0 0.0
        %1786 = vmatpush1.msra.mxu0 %v1769
        %1787 = vmatprep.subr.mxu0 0.0
        %1788 = vmatpush1.msra.mxu0 0.0
        %1789 = vmatprep.subr.mxu0 0.0
        %1790 = vmatpush1.msra.mxu0 0.0
        %1791 = vmatprep.subr.mxu0 0.0
        %1792 = vmatpush1.msra.mxu0 0.0
        %1793 = vmatprep.subr.mxu0 0.0
        %1794 = vmatpush1.msra.mxu0 0.0
        %1795 = vmatprep.subr.mxu0 0.0
        %1796 = vmatpush1.msra.mxu0 0.0
        %1797 = vmatprep.subr.mxu0 0.0
        %1798 = vmatpush1.msra.mxu0 0.0
        %1799 = vmatprep.subr.mxu0 0.0
        %1800 = vmatpush1.msra.mxu0 0.0
        %1801 = vmatprep.subr.mxu0 0.0
        %1802 = vmatpush1.msra.mxu0 0.0
        %1803 = vmatprep.subr.mxu0 0.0
        %1804 = vmatpush1.msra.mxu0 0.0
        %1805 = vmatprep.subr.mxu0 0.0
        %1806 = vmatpush1.msra.mxu0 0.0
        %1807 = vmatprep.subr.mxu0 0.0
        %1808 = vmatpush1.msra.mxu0 0.0
        %1809 = vmatprep.subr.mxu0 0.0
        %1810 = vmatpush1.msra.mxu0 0.0
        %1811 = vmatprep.subr.mxu0 0.0
        %1812 = vmatpush1.msra.mxu0 0.0
        %1813 = vmatprep.subr.mxu0 0.0
        %1814 = vmatpush1.msra.mxu0 0.0
        %1815 = vmatprep.subr.mxu0 0.0
        %1816 = vmatpush1.msra.mxu0 0.0
        %1817 = vmatprep.subr.mxu0 0.0
        %1818 = vmatpush1.msra.mxu0 0.0
        %1819 = vmatprep.subr.mxu0 0.0
        %1820 = vmatpush1.msra.mxu0 0.0
        %1821 = vmatprep.subr.mxu0 0.0
        %1822 = vmatpush1.msra.mxu0 0.0
        %1823 = vmatprep.subr.mxu0 0.0
        %1824 = vmatpush1.msra.mxu0 0.0
        %1825 = vmatprep.subr.mxu0 0.0
        %1826 = vmatpush1.msra.mxu0 0.0
        %1827 = vmatprep.subr.mxu0 0.0
        %1828 = vmatpush1.msra.mxu0 0.0
        %1829 = vmatprep.subr.mxu0 0.0
        %1830 = vmatpush1.msra.mxu0 0.0
        %1831 = vmatprep.subr.mxu0 0.0
        %1832 = vmatpush1.msra.mxu0 0.0
        %1833 = vmatprep.subr.mxu0 0.0
        %1834 = vmatpush1.msra.mxu0 0.0
        %1835 = vmatprep.subr.mxu0 0.0
        %1836 = vmatpush1.msra.mxu0 0.0
        %1837 = vmatprep.subr.mxu0 0.0
        %1838 = vmatpush1.msra.mxu0 0.0
        %1839 = vmatprep.subr.mxu0 0.0
        %1840 = vmatpush1.msra.mxu0 0.0
        %1841 = vmatprep.subr.mxu0 0.0
        %1842 = vmatpush1.msra.mxu0 0.0
        %1843 = vmatprep.mubr.f32.mxu0 0.0
        %1844 = vmatmul.mubr.f32.gmra.mrb[0].mxu0 %v1771
        %v1845 = vpop.f32.mrb[0].mxu0
        %v1846 = vadd.f32 0.0, %v1845
        %v1847 = vpop.f32.mrb[0].mxu0
        %1848 = vmatprep.mubr.f32.mxu0 0.0
        %1849 = vmatmul.mubr.f32.gmra.mrb[0].mxu0 %v1774
        %v1850 = vpop.f32.mrb[0].mxu0
        %v1851 = vadd.f32 0.0, %v1850
        %v1852 = vpop.f32.mrb[0].mxu0
        %1853 = vmatprep.mubr.f32.mxu0 0.0
        %1854 = vmatmul.mubr.f32.gmra.mrb[0].mxu0 %v1777
        %v1855 = vpop.f32.mrb[0].mxu0
        %v1856 = vadd.f32 0.0, %v1855
        %v1857 = vpop.f32.mrb[0].mxu0
        %1858 = vdwg.mxu0
        %v1860 = vsel %vm1542, %v1753, 0
        %v1863 = vsel %vm1542, %v1752, 0
        %v1866 = vsel %vm1542, %v1751, 0
        %1868 = vmatprep.subr.mxu0 0.0
        %1869 = vmatpush1.msra.mxu0 %v1761
        %1870 = vmatprep.subr.mxu0 0.0
        %1871 = vmatpush1.msra.mxu0 %v1762
        %1872 = vmatprep.subr.mxu0 0.0
        %1873 = vmatpush1.msra.mxu0 %v1763
        %1874 = vmatprep.subr.mxu0 0.0
        %1875 = vmatpush1.msra.mxu0 %v1764
        %1876 = vmatprep.subr.mxu0 0.0
        %1877 = vmatpush1.msra.mxu0 0.0
        %1878 = vmatprep.subr.mxu0 0.0
        %1879 = vmatpush1.msra.mxu0 0.0
        %1880 = vmatprep.subr.mxu0 0.0
        %1881 = vmatpush1.msra.mxu0 0.0
        %1882 = vmatprep.subr.mxu0 0.0
        %1883 = vmatpush1.msra.mxu0 0.0
        %1884 = vmatprep.subr.mxu0 0.0
        %1885 = vmatpush1.msra.mxu0 0.0
        %1886 = vmatprep.subr.mxu0 0.0
        %1887 = vmatpush1.msra.mxu0 0.0
        %1888 = vmatprep.subr.mxu0 0.0
        %1889 = vmatpush1.msra.mxu0 0.0
        %1890 = vmatprep.subr.mxu0 0.0
        %1891 = vmatpush1.msra.mxu0 0.0
        %1892 = vmatprep.subr.mxu0 0.0
        %1893 = vmatpush1.msra.mxu0 0.0
        %1894 = vmatprep.subr.mxu0 0.0
        %1895 = vmatpush1.msra.mxu0 0.0
        %1896 = vmatprep.subr.mxu0 0.0
        %1897 = vmatpush1.msra.mxu0 0.0
        %1898 = vmatprep.subr.mxu0 0.0
        %1899 = vmatpush1.msra.mxu0 0.0
        %1900 = vmatprep.subr.mxu0 0.0
        %1901 = vmatpush1.msra.mxu0 0.0
        %1902 = vmatprep.subr.mxu0 0.0
        %1903 = vmatpush1.msra.mxu0 0.0
        %1904 = vmatprep.subr.mxu0 0.0
        %1905 = vmatpush1.msra.mxu0 0.0
        %1906 = vmatprep.subr.mxu0 0.0
        %1907 = vmatpush1.msra.mxu0 0.0
        %1908 = vmatprep.subr.mxu0 0.0
        %1909 = vmatpush1.msra.mxu0 0.0
        %1910 = vmatprep.subr.mxu0 0.0
        %1911 = vmatpush1.msra.mxu0 0.0
        %1912 = vmatprep.subr.mxu0 0.0
        %1913 = vmatpush1.msra.mxu0 0.0
        %1914 = vmatprep.subr.mxu0 0.0
        %1915 = vmatpush1.msra.mxu0 0.0
        %1916 = vmatprep.subr.mxu0 0.0
        %1917 = vmatpush1.msra.mxu0 0.0
        %1918 = vmatprep.subr.mxu0 0.0
        %1919 = vmatpush1.msra.mxu0 0.0
        %1920 = vmatprep.subr.mxu0 0.0
        %1921 = vmatpush1.msra.mxu0 0.0
        %1922 = vmatprep.subr.mxu0 0.0
        %1923 = vmatpush1.msra.mxu0 0.0
        %1924 = vmatprep.subr.mxu0 0.0
        %1925 = vmatpush1.msra.mxu0 0.0
        %1926 = vmatprep.subr.mxu0 0.0
        %1927 = vmatpush1.msra.mxu0 0.0
        %1928 = vmatprep.subr.mxu0 0.0
        %1929 = vmatpush1.msra.mxu0 0.0
        %1930 = vmatprep.subr.mxu0 0.0
        %1931 = vmatpush1.msra.mxu0 0.0
        %1932 = vmatprep.mubr.f32.mxu0 0.0
        %1933 = vmatmul.mubr.f32.gmra.mrb[0].mxu0 %v1860
        %v1934 = vpop.f32.mrb[0].mxu0
        %v1935 = vadd.f32 %v1846, %v1934
        %v1936 = vpop.f32.mrb[0].mxu0
        %1937 = vmatprep.mubr.f32.mxu0 0.0
        %1938 = vmatmul.mubr.f32.gmra.mrb[0].mxu0 %v1863
        %v1939 = vpop.f32.mrb[0].mxu0
        %v1940 = vadd.f32 %v1851, %v1939
        %v1941 = vpop.f32.mrb[0].mxu0
        %1942 = vmatprep.mubr.f32.mxu0 0.0
        %1943 = vmatmul.mubr.f32.gmra.mrb[0].mxu0 %v1866
        %v1944 = vpop.f32.mrb[0].mxu0
        %v1945 = vadd.f32 %v1856, %v1944
        %v1946 = vpop.f32.mrb[0].mxu0
        %1947 = vdwg.mxu0
        %s1948 = scalar_lea.vmem %s7, 64
        %v1949 = vld [vmem:[%s1948] sm:$0xff]
        %v1950 = vld [vmem:[%s1948 + $0x8] sm:$0xff]
        %v1951 = vld [vmem:[%s1948 + $0x10] sm:$0xff]
        %v1952 = vld [vmem:[%s1948 + $0x18] sm:$0xff]
        %v1954 = vsel %vm1542, %v1759, 0
        %v1957 = vsel %vm1542, %v1758, 0
        %v1960 = vsel %vm1542, %v1760, 0
        %1962 = vmatprep.subr.mxu0 0.0
        %1963 = vmatpush1.msra.mxu0 %v1949
        %1964 = vmatprep.subr.mxu0 0.0
        %1965 = vmatpush1.msra.mxu0 %v1950
        %1966 = vmatprep.subr.mxu0 0.0
        %1967 = vmatpush1.msra.mxu0 %v1951
        %1968 = vmatprep.subr.mxu0 0.0
        %1969 = vmatpush1.msra.mxu0 %v1952
        %1970 = vmatprep.subr.mxu0 0.0
        %1971 = vmatpush1.msra.mxu0 0.0
        %1972 = vmatprep.subr.mxu0 0.0
        %1973 = vmatpush1.msra.mxu0 0.0
        %1974 = vmatprep.subr.mxu0 0.0
        %1975 = vmatpush1.msra.mxu0 0.0
        %1976 = vmatprep.subr.mxu0 0.0
        %1977 = vmatpush1.msra.mxu0 0.0
        %1978 = vmatprep.subr.mxu0 0.0
        %1979 = vmatpush1.msra.mxu0 0.0
        %1980 = vmatprep.subr.mxu0 0.0
        %1981 = vmatpush1.msra.mxu0 0.0
        %1982 = vmatprep.subr.mxu0 0.0
        %1983 = vmatpush1.msra.mxu0 0.0
        %1984 = vmatprep.subr.mxu0 0.0
        %1985 = vmatpush1.msra.mxu0 0.0
        %1986 = vmatprep.subr.mxu0 0.0
        %1987 = vmatpush1.msra.mxu0 0.0
        %1988 = vmatprep.subr.mxu0 0.0
        %1989 = vmatpush1.msra.mxu0 0.0
        %1990 = vmatprep.subr.mxu0 0.0
        %1991 = vmatpush1.msra.mxu0 0.0
        %1992 = vmatprep.subr.mxu0 0.0
        %1993 = vmatpush1.msra.mxu0 0.0
        %1994 = vmatprep.subr.mxu0 0.0
        %1995 = vmatpush1.msra.mxu0 0.0
        %1996 = vmatprep.subr.mxu0 0.0
        %1997 = vmatpush1.msra.mxu0 0.0
        %1998 = vmatprep.subr.mxu0 0.0
        %1999 = vmatpush1.msra.mxu0 0.0
        %2000 = vmatprep.subr.mxu0 0.0
        %2001 = vmatpush1.msra.mxu0 0.0
        %2002 = vmatprep.subr.mxu0 0.0
        %2003 = vmatpush1.msra.mxu0 0.0
        %2004 = vmatprep.subr.mxu0 0.0
        %2005 = vmatpush1.msra.mxu0 0.0
        %2006 = vmatprep.subr.mxu0 0.0
        %2007 = vmatpush1.msra.mxu0 0.0
        %2008 = vmatprep.subr.mxu0 0.0
        %2009 = vmatpush1.msra.mxu0 0.0
        %2010 = vmatprep.subr.mxu0 0.0
        %2011 = vmatpush1.msra.mxu0 0.0
        %2012 = vmatprep.subr.mxu0 0.0
        %2013 = vmatpush1.msra.mxu0 0.0
        %2014 = vmatprep.subr.mxu0 0.0
        %2015 = vmatpush1.msra.mxu0 0.0
        %2016 = vmatprep.subr.mxu0 0.0
        %2017 = vmatpush1.msra.mxu0 0.0
        %2018 = vmatprep.subr.mxu0 0.0
        %2019 = vmatpush1.msra.mxu0 0.0
        %2020 = vmatprep.subr.mxu0 0.0
        %2021 = vmatpush1.msra.mxu0 0.0
        %2022 = vmatprep.subr.mxu0 0.0
        %2023 = vmatpush1.msra.mxu0 0.0
        %2024 = vmatprep.subr.mxu0 0.0
        %2025 = vmatpush1.msra.mxu0 0.0
        %2026 = vmatprep.mubr.f32.mxu0 0.0
        %2027 = vmatmul.mubr.f32.gmra.mrb[0].mxu0 %v1954
        %v2028 = vpop.f32.mrb[0].mxu0
        %v2029 = vadd.f32 0.0, %v2028
        %v2030 = vpop.f32.mrb[0].mxu0
        %2031 = vmatprep.mubr.f32.mxu0 0.0
        %2032 = vmatmul.mubr.f32.gmra.mrb[0].mxu0 %v1957
        %v2033 = vpop.f32.mrb[0].mxu0
        %v2034 = vadd.f32 0.0, %v2033
        %v2035 = vpop.f32.mrb[0].mxu0
        %2036 = vmatprep.mubr.f32.mxu0 0.0
        %2037 = vmatmul.mubr.f32.gmra.mrb[0].mxu0 %v1960
        %v2038 = vpop.f32.mrb[0].mxu0
        %v2039 = vadd.f32 0.0, %v2038
        %v2040 = vpop.f32.mrb[0].mxu0
        %2041 = vdwg.mxu0
        %v2042 = vadd.f32 %v1935, %v2029
        %v2043 = vadd.f32 %v1940, %v2034
        %v2044 = vadd.f32 %v1945, %v2039
        %v2045 = vld [vmem:[%s8] sm:$0x1]
        %v2047 = vlaneseq
        %v2048 = vshrl.u32 %v2047, 7
        %v2049 = vsub.s32 0, %v2048
        %v2050 = vrot.slane %v2045, %v2049
        %v2052 = vadd.f32 %v2042, %v2050
        %v2053 = vadd.f32 %v2043, %v2050
        %v2054 = vadd.f32 %v2044, %v2050
        %v2055 = vmax.f32 %v2052, 0.0
        %v2056 = vmax.f32 %v2053, 0.0
        %v2057 = vmax.f32 %v2054, 0.0
        %v2058 = vsel %vm1741, %v2055, 0.0
        %v2059 = vsel %vm1742, %v2056, 0.0
        %v2060 = vsel %vm1743, %v2057, 0.0
        %v2061 = vrot.slane %v2058, 7
        %v2062 = vrot.slane %v2059, 7
        %v2063 = vrot.slane %v2060, 7
        %v2064 = vsel %vm1750, %v2062, %v2063
        %v2065 = vsel %vm1750, %v2061, %v2062
        %v2066 = vsel %vm1750, %v2063, %v2061
        %v2067 = vrot.slane %v2058, 1
        %v2068 = vrot.slane %v2059, 1
        %v2069 = vrot.slane %v2060, 1
        %v2070 = vsel %vm1757, %v2068, %v2069
        %v2071 = vsel %vm1757, %v2067, %v2068
        %v2072 = vsel %vm1757, %v2069, %v2067
        %v2073 = vld [vmem:[%s9] sm:$0xff]
        %v2074 = vld [vmem:[%s9 + $0x8] sm:$0xff]
        %v2075 = vld [vmem:[%s9 + $0x10] sm:$0xff]
        %v2076 = vld [vmem:[%s9 + $0x18] sm:$0xff]
        %v2077 = vld [vmem:[%s9 + $0x20] sm:$0xff]
        %v2078 = vld [vmem:[%s9 + $0x28] sm:$0xff]
        %v2079 = vld [vmem:[%s9 + $0x30] sm:$0xff]
        %v2080 = vld [vmem:[%s9 + $0x38] sm:$0xff]
        %s2081 = scalar_lea.vmem %s9, 64
        %v2082 = vld [vmem:[%s2081] sm:$0xff]
        %v2083 = vld [vmem:[%s2081 + $0x8] sm:$0xff]
        %v2084 = vld [vmem:[%s2081 + $0x10] sm:$0xff]
        %v2085 = vld [vmem:[%s2081 + $0x18] sm:$0xff]
        %v2086 = vld [vmem:[%s2081 + $0x20] sm:$0xff]
        %v2087 = vld [vmem:[%s2081 + $0x28] sm:$0xff]
        %v2088 = vld [vmem:[%s2081 + $0x30] sm:$0xff]
        %v2089 = vld [vmem:[%s2081 + $0x38] sm:$0xff]
        %vm2090 = vcmask 523264
        %v2092 = vsel %vm2090, %v2058, 0
        %v2095 = vsel %vm2090, %v2059, 0
        %v2098 = vsel %vm2090, %v2060, 0
        %2100 = vmatprep.subr.mxu0 0.0
        %2101 = vmatpush1.msra.mxu0 %v2082
        %2102 = vmatprep.subr.mxu0 0.0
        %2103 = vmatpush1.msra.mxu0 %v2083
        %2104 = vmatprep.subr.mxu0 0.0
        %2105 = vmatpush1.msra.mxu0 %v2084
        %2106 = vmatprep.subr.mxu0 0.0
        %2107 = vmatpush1.msra.mxu0 %v2085
        %2108 = vmatprep.subr.mxu0 0.0
        %2109 = vmatpush1.msra.mxu0 %v2086
        %2110 = vmatprep.subr.mxu0 0.0
        %2111 = vmatpush1.msra.mxu0 %v2087
        %2112 = vmatprep.subr.mxu0 0.0
        %2113 = vmatpush1.msra.mxu0 %v2088
        %2114 = vmatprep.subr.mxu0 0.0
        %2115 = vmatpush1.msra.mxu0 %v2089
        %2116 = vmatprep.subr.mxu0 0.0
        %2117 = vmatpush1.msra.mxu0 0.0
        %2118 = vmatprep.subr.mxu0 0.0
        %2119 = vmatpush1.msra.mxu0 0.0
        %2120 = vmatprep.subr.mxu0 0.0
        %2121 = vmatpush1.msra.mxu0 0.0
        %2122 = vmatprep.subr.mxu0 0.0
        %2123 = vmatpush1.msra.mxu0 0.0
        %2124 = vmatprep.subr.mxu0 0.0
        %2125 = vmatpush1.msra.mxu0 0.0
        %2126 = vmatprep.subr.mxu0 0.0
        %2127 = vmatpush1.msra.mxu0 0.0
        %2128 = vmatprep.subr.mxu0 0.0
        %2129 = vmatpush1.msra.mxu0 0.0
        %2130 = vmatprep.subr.mxu0 0.0
        %2131 = vmatpush1.msra.mxu0 0.0
        %2132 = vmatprep.subr.mxu0 0.0
        %2133 = vmatpush1.msra.mxu0 0.0
        %2134 = vmatprep.subr.mxu0 0.0
        %2135 = vmatpush1.msra.mxu0 0.0
        %2136 = vmatprep.subr.mxu0 0.0
        %2137 = vmatpush1.msra.mxu0 0.0
        %2138 = vmatprep.subr.mxu0 0.0
        %2139 = vmatpush1.msra.mxu0 0.0
        %2140 = vmatprep.subr.mxu0 0.0
        %2141 = vmatpush1.msra.mxu0 0.0
        %2142 = vmatprep.subr.mxu0 0.0
        %2143 = vmatpush1.msra.mxu0 0.0
        %2144 = vmatprep.subr.mxu0 0.0
        %2145 = vmatpush1.msra.mxu0 0.0
        %2146 = vmatprep.subr.mxu0 0.0
        %2147 = vmatpush1.msra.mxu0 0.0
        %2148 = vmatprep.subr.mxu0 0.0
        %2149 = vmatpush1.msra.mxu0 0.0
        %2150 = vmatprep.subr.mxu0 0.0
        %2151 = vmatpush1.msra.mxu0 0.0
        %2152 = vmatprep.subr.mxu0 0.0
        %2153 = vmatpush1.msra.mxu0 0.0
        %2154 = vmatprep.subr.mxu0 0.0
        %2155 = vmatpush1.msra.mxu0 0.0
        %2156 = vmatprep.subr.mxu0 0.0
        %2157 = vmatpush1.msra.mxu0 0.0
        %2158 = vmatprep.subr.mxu0 0.0
        %2159 = vmatpush1.msra.mxu0 0.0
        %2160 = vmatprep.subr.mxu0 0.0
        %2161 = vmatpush1.msra.mxu0 0.0
        %2162 = vmatprep.subr.mxu0 0.0
        %2163 = vmatpush1.msra.mxu0 0.0
        %2164 = vmatprep.mubr.f32.mxu0 0.0
        %2165 = vmatmul.mubr.f32.gmra.mrb[0].mxu0 %v2092
        %v2166 = vpop.f32.mrb[0].mxu0
        %v2167 = vpop.f32.mrb[0].mxu0
        %2168 = vmatprep.mubr.f32.mxu0 0.0
        %2169 = vmatmul.mubr.f32.gmra.mrb[0].mxu0 %v2095
        %v2170 = vpop.f32.mrb[0].mxu0
        %v2171 = vadd.f32 0.0, %v2170
        %v2172 = vpop.f32.mrb[0].mxu0
        %2173 = vmatprep.mubr.f32.mxu0 0.0
        %2174 = vmatmul.mubr.f32.gmra.mrb[0].mxu0 %v2098
        %v2175 = vpop.f32.mrb[0].mxu0
        %v2176 = vpop.f32.mrb[0].mxu0
        %2177 = vdwg.mxu0
        %v2179 = vsel %vm2090, %v2066, 0
        %v2182 = vsel %vm2090, %v2065, 0
        %v2185 = vsel %vm2090, %v2064, 0
        %2187 = vmatprep.subr.mxu0 0.0
        %2188 = vmatpush1.msra.mxu0 %v2073
        %2189 = vmatprep.subr.mxu0 0.0
        %2190 = vmatpush1.msra.mxu0 %v2074
        %2191 = vmatprep.subr.mxu0 0.0
        %2192 = vmatpush1.msra.mxu0 %v2075
        %2193 = vmatprep.subr.mxu0 0.0
        %2194 = vmatpush1.msra.mxu0 %v2076
        %2195 = vmatprep.subr.mxu0 0.0
        %2196 = vmatpush1.msra.mxu0 %v2077
        %2197 = vmatprep.subr.mxu0 0.0
        %2198 = vmatpush1.msra.mxu0 %v2078
        %2199 = vmatprep.subr.mxu0 0.0
        %2200 = vmatpush1.msra.mxu0 %v2079
        %2201 = vmatprep.subr.mxu0 0.0
        %2202 = vmatpush1.msra.mxu0 %v2080
        %2203 = vmatprep.subr.mxu0 0.0
        %2204 = vmatpush1.msra.mxu0 0.0
        %2205 = vmatprep.subr.mxu0 0.0
        %2206 = vmatpush1.msra.mxu0 0.0
        %2207 = vmatprep.subr.mxu0 0.0
        %2208 = vmatpush1.msra.mxu0 0.0
        %2209 = vmatprep.subr.mxu0 0.0
        %2210 = vmatpush1.msra.mxu0 0.0
        %2211 = vmatprep.subr.mxu0 0.0
        %2212 = vmatpush1.msra.mxu0 0.0
        %2213 = vmatprep.subr.mxu0 0.0
        %2214 = vmatpush1.msra.mxu0 0.0
        %2215 = vmatprep.subr.mxu0 0.0
        %2216 = vmatpush1.msra.mxu0 0.0
        %2217 = vmatprep.subr.mxu0 0.0
        %2218 = vmatpush1.msra.mxu0 0.0
        %2219 = vmatprep.subr.mxu0 0.0
        %2220 = vmatpush1.msra.mxu0 0.0
        %2221 = vmatprep.subr.mxu0 0.0
        %2222 = vmatpush1.msra.mxu0 0.0
        %2223 = vmatprep.subr.mxu0 0.0
        %2224 = vmatpush1.msra.mxu0 0.0
        %2225 = vmatprep.subr.mxu0 0.0
        %2226 = vmatpush1.msra.mxu0 0.0
        %2227 = vmatprep.subr.mxu0 0.0
        %2228 = vmatpush1.msra.mxu0 0.0
        %2229 = vmatprep.subr.mxu0 0.0
        %2230 = vmatpush1.msra.mxu0 0.0
        %2231 = vmatprep.subr.mxu0 0.0
        %2232 = vmatpush1.msra.mxu0 0.0
        %2233 = vmatprep.subr.mxu0 0.0
        %2234 = vmatpush1.msra.mxu0 0.0
        %2235 = vmatprep.subr.mxu0 0.0
        %2236 = vmatpush1.msra.mxu0 0.0
        %2237 = vmatprep.subr.mxu0 0.0
        %2238 = vmatpush1.msra.mxu0 0.0
        %2239 = vmatprep.subr.mxu0 0.0
        %2240 = vmatpush1.msra.mxu0 0.0
        %2241 = vmatprep.subr.mxu0 0.0
        %2242 = vmatpush1.msra.mxu0 0.0
        %2243 = vmatprep.subr.mxu0 0.0
        %2244 = vmatpush1.msra.mxu0 0.0
        %2245 = vmatprep.subr.mxu0 0.0
        %2246 = vmatpush1.msra.mxu0 0.0
        %2247 = vmatprep.subr.mxu0 0.0
        %2248 = vmatpush1.msra.mxu0 0.0
        %2249 = vmatprep.subr.mxu0 0.0
        %2250 = vmatpush1.msra.mxu0 0.0
        %2251 = vmatprep.mubr.f32.mxu0 0.0
        %2252 = vmatmul.mubr.f32.gmra.mrb[0].mxu0 %v2179
        %v2253 = vpop.f32.mrb[0].mxu0
        %v2254 = vpop.f32.mrb[0].mxu0
        %2255 = vmatprep.mubr.f32.mxu0 0.0
        %2256 = vmatmul.mubr.f32.gmra.mrb[0].mxu0 %v2182
        %v2257 = vpop.f32.mrb[0].mxu0
        %v2258 = vadd.f32 %v2171, %v2257
        %v2259 = vpop.f32.mrb[0].mxu0
        %2260 = vmatprep.mubr.f32.mxu0 0.0
        %2261 = vmatmul.mubr.f32.gmra.mrb[0].mxu0 %v2185
        %v2262 = vpop.f32.mrb[0].mxu0
        %v2263 = vpop.f32.mrb[0].mxu0
        %2264 = vdwg.mxu0
        %s2265 = scalar_lea.vmem %s9, 128
        %v2266 = vld [vmem:[%s2265] sm:$0xff]
        %v2267 = vld [vmem:[%s2265 + $0x8] sm:$0xff]
        %v2268 = vld [vmem:[%s2265 + $0x10] sm:$0xff]
        %v2269 = vld [vmem:[%s2265 + $0x18] sm:$0xff]
        %v2270 = vld [vmem:[%s2265 + $0x20] sm:$0xff]
        %v2271 = vld [vmem:[%s2265 + $0x28] sm:$0xff]
        %v2272 = vld [vmem:[%s2265 + $0x30] sm:$0xff]
        %v2273 = vld [vmem:[%s2265 + $0x38] sm:$0xff]
        %v2275 = vsel %vm2090, %v2071, 0
        %v2278 = vsel %vm2090, %v2070, 0
        %v2281 = vsel %vm2090, %v2072, 0
        %2283 = vmatprep.subr.mxu0 0.0
        %2284 = vmatpush1.msra.mxu0 %v2266
        %2285 = vmatprep.subr.mxu0 0.0
        %2286 = vmatpush1.msra.mxu0 %v2267
        %2287 = vmatprep.subr.mxu0 0.0
        %2288 = vmatpush1.msra.mxu0 %v2268
        %2289 = vmatprep.subr.mxu0 0.0
        %2290 = vmatpush1.msra.mxu0 %v2269
        %2291 = vmatprep.subr.mxu0 0.0
        %2292 = vmatpush1.msra.mxu0 %v2270
        %2293 = vmatprep.subr.mxu0 0.0
        %2294 = vmatpush1.msra.mxu0 %v2271
        %2295 = vmatprep.subr.mxu0 0.0
        %2296 = vmatpush1.msra.mxu0 %v2272
        %2297 = vmatprep.subr.mxu0 0.0
        %2298 = vmatpush1.msra.mxu0 %v2273
        %2299 = vmatprep.subr.mxu0 0.0
        %2300 = vmatpush1.msra.mxu0 0.0
        %2301 = vmatprep.subr.mxu0 0.0
        %2302 = vmatpush1.msra.mxu0 0.0
        %2303 = vmatprep.subr.mxu0 0.0
        %2304 = vmatpush1.msra.mxu0 0.0
        %2305 = vmatprep.subr.mxu0 0.0
        %2306 = vmatpush1.msra.mxu0 0.0
        %2307 = vmatprep.subr.mxu0 0.0
        %2308 = vmatpush1.msra.mxu0 0.0
        %2309 = vmatprep.subr.mxu0 0.0
        %2310 = vmatpush1.msra.mxu0 0.0
        %2311 = vmatprep.subr.mxu0 0.0
        %2312 = vmatpush1.msra.mxu0 0.0
        %2313 = vmatprep.subr.mxu0 0.0
        %2314 = vmatpush1.msra.mxu0 0.0
        %2315 = vmatprep.subr.mxu0 0.0
        %2316 = vmatpush1.msra.mxu0 0.0
        %2317 = vmatprep.subr.mxu0 0.0
        %2318 = vmatpush1.msra.mxu0 0.0
        %2319 = vmatprep.subr.mxu0 0.0
        %2320 = vmatpush1.msra.mxu0 0.0
        %2321 = vmatprep.subr.mxu0 0.0
        %2322 = vmatpush1.msra.mxu0 0.0
        %2323 = vmatprep.subr.mxu0 0.0
        %2324 = vmatpush1.msra.mxu0 0.0
        %2325 = vmatprep.subr.mxu0 0.0
        %2326 = vmatpush1.msra.mxu0 0.0
        %2327 = vmatprep.subr.mxu0 0.0
        %2328 = vmatpush1.msra.mxu0 0.0
        %2329 = vmatprep.subr.mxu0 0.0
        %2330 = vmatpush1.msra.mxu0 0.0
        %2331 = vmatprep.subr.mxu0 0.0
        %2332 = vmatpush1.msra.mxu0 0.0
        %2333 = vmatprep.subr.mxu0 0.0
        %2334 = vmatpush1.msra.mxu0 0.0
        %2335 = vmatprep.subr.mxu0 0.0
        %2336 = vmatpush1.msra.mxu0 0.0
        %2337 = vmatprep.subr.mxu0 0.0
        %2338 = vmatpush1.msra.mxu0 0.0
        %2339 = vmatprep.subr.mxu0 0.0
        %2340 = vmatpush1.msra.mxu0 0.0
        %2341 = vmatprep.subr.mxu0 0.0
        %2342 = vmatpush1.msra.mxu0 0.0
        %2343 = vmatprep.subr.mxu0 0.0
        %2344 = vmatpush1.msra.mxu0 0.0
        %2345 = vmatprep.subr.mxu0 0.0
        %2346 = vmatpush1.msra.mxu0 0.0
        %2347 = vmatprep.mubr.f32.mxu0 0.0
        %2348 = vmatmul.mubr.f32.gmra.mrb[0].mxu0 %v2275
        %v2349 = vpop.f32.mrb[0].mxu0
        %v2350 = vpop.f32.mrb[0].mxu0
        %2351 = vmatprep.mubr.f32.mxu0 0.0
        %2352 = vmatmul.mubr.f32.gmra.mrb[0].mxu0 %v2278
        %v2353 = vpop.f32.mrb[0].mxu0
        %v2354 = vadd.f32 0.0, %v2353
        %v2355 = vpop.f32.mrb[0].mxu0
        %2356 = vmatprep.mubr.f32.mxu0 0.0
        %2357 = vmatmul.mubr.f32.gmra.mrb[0].mxu0 %v2281
        %v2358 = vpop.f32.mrb[0].mxu0
        %v2359 = vpop.f32.mrb[0].mxu0
        %2360 = vdwg.mxu0
        %v2361 = vadd.f32 %v2258, %v2354
        %v2362 = vld [vmem:[%s10] sm:$0x1]
        %v2364 = vlaneseq
        %v2365 = vshrl.u32 %v2364, 7
        %v2366 = vsub.s32 0, %v2365
        %v2367 = vrot.slane %v2362, %v2366
        %v2369 = vadd.f32 %v2361, %v2367
        %v2370 = vmax.f32 %v2369, 0.0
        %v2371 = vadd.f32 %v1637, %v2370
        %2372 = vst.msk [vmem:[%s393] sm:$0xff] %vm1542, %v2371
        %s2373 = sand.u32 %s283, 1
        %s2374 = scalar_lea.sflag [#allocation7], %s2373
        %s2375 = sand.u32 %s283, 1
        %s2376 = smul.addr %s2375, 8
        %s2377 = scalar_lea.vmem [#allocation6], %s2376
        // Predicated region
        $region69: #{tpu_custom_call.1} parent=63 // pred_check
          %p2378 = pneg %p293
        $region70: #{tpu_custom_call.1} parent=63 // pred_check_branch
          %2380 = sbr.rel (%p2378) target = $region72
        $region71: #{tpu_custom_call.1} parent=63 // pred_region
          %s2382 = ssub.s32 128, 128
          %2383 = vsyncadd %s2374, %s2382
          %s2384 = smul.addr %s29, 2
          %s2385 = sadd.s32 %s30, %s2384
          %s2386 = smul.addr %s2385, 128
          %s2387 = scalar_lea.hbm %s11, %s2386
          %s2389 = sshll.u32 %s2377, 4
          %s2390 = int_to_ptr.vmem [resolvable:$true] %s2389
          %2392 = dma.vmem_to_hbm [thread:$0]  %s2390, 128, %s2387, %s2374
        $region72: #{tpu_custom_call.1} parent=63 // pred_fallthru
          _
      $region64: #{tpu_custom_call.1} parent=5 // pred_fallthru
        _
      %p2393 = scmp.le.s32.totalorder 2, %s20
      // Predicated region
      $region73: #{tpu_custom_call.1} parent=5 // pred_check
        %p2394 = pneg %p2393
      $region74: #{tpu_custom_call.1} parent=5 // pred_check_branch
        %2396 = sbr.rel (%p2394) target = $region76
      $region75: #{tpu_custom_call.1} parent=5 // pred_region
        %s2397 = ssub.s32 %s20, 2
        // Predicated region
        $region77: #{tpu_custom_call.1} parent=75 // pred_check
          %p2398 = pneg %p299
        $region78: #{tpu_custom_call.1} parent=75 // pred_check_branch
          %2400 = sbr.rel (%p2398) target = $region80
        $region79: #{tpu_custom_call.1} parent=75 // pred_region
          %s2401 = sand.u32 %s284, 1
          %s2402 = scalar_lea.sflag [#allocation7], %s2401
          %s2403 = sand.u32 %s284, 1
          %s2404 = smul.addr %s2403, 8
          %s2405 = scalar_lea.vmem [#allocation6], %s2404
          %2406 = dma.done %s2402, 128
        $region80: #{tpu_custom_call.1} parent=75 // pred_fallthru
          _
      $region76: #{tpu_custom_call.1} parent=5 // pred_fallthru
        _
    $region6: #{tpu_custom_call.1} parent=1 // loop_footer
      %s24 = sadd.s32 1, %s20
    $region7: #{tpu_custom_call.1} parent=1 // loop_footer_branch
      %19 = sbr.rel target = $region3
    $region8: #{tpu_custom_call.1} parent=1 // loop_exit
      _
    %2407 = vsyncpa [#allocation7], 1
    %s2408 = scalar_lea.sflag [#allocation7], 1
    %2409 = vsyncpa %s2408, 1

</llo_original>
